<compile_context>
chip_gen: v6e
topology: v6e:2x2x1
jax: 0.10.0
libtpu: 0.0.40
codegen_flags: <defaults>
</compile_context>

<pallas_src>
import math
import functools

import numpy as np
import jax
import jax.numpy as jnp
from jax import lax
from jax.experimental import pallas as pl
from jax.experimental.pallas import tpu as pltpu

# ----------------------------- "ModelConfig" ---------------------------------
DIM = 32
N_HEADS = 4
N_KV_HEADS = 2
HEAD_DIM = DIM // N_HEADS          # 8
HALF_DIM = HEAD_DIM // 2           # 4
N_REP = N_HEADS // N_KV_HEADS      # 2
ROPE_THETA = 10000.0
MAX_SEQ_LEN = 8                    # == seq len below, so the KV cache is fully written
MAX_BATCH = 2
DTYPE = jnp.float32


# ------------------------------ fused kernel ----------------------------------
def _attention_kernel(x_ref, wqkv_ref, wo_ref, rope_ref, o_ref,
                      *, n_heads, n_kv_heads, head_dim):
    """One grid step == one batch element; everything stays in VMEM/vregs."""
    f32 = jnp.float32
    hh = head_dim // 2
    n_rep = n_heads // n_kv_heads
    wq2 = n_heads * hh          # width of each Q even/odd slab
    wk2 = n_kv_heads * hh       # width of each K even/odd slab

    x = x_ref[...].astype(f32)                                   # (S, dim)

    # One fused QKV projection.  Column layout (built in the wrapper):
    #   [ Q_even | Q_odd | K_even | K_odd | V ], scale folded into Q columns.
    qkv = jnp.dot(x, wqkv_ref[...].astype(f32),
                  preferred_element_type=f32)
    off = 0
    q_e = qkv[:, off:off + wq2]; off += wq2
    q_o = qkv[:, off:off + wq2]; off += wq2
    k_e = qkv[:, off:off + wk2]; off += wk2
    k_o = qkv[:, off:off + wk2]; off += wk2
    v = qkv[:, off:]                                             # (S, Hkv*hd), natural order

    # Interleaved RoPE with even/odd elements kept as separate slabs: the
    # rotate-half is absorbed into which slab multiplies which (pure VALU).
    cos = rope_ref[:, :wq2]                                      # lane j -> cos(theta_{j % hh})
    sin = rope_ref[:, wq2:]
    cos_k, sin_k = cos[:, :wk2], sin[:, :wk2]
    qe = q_e * cos - q_o * sin
    qo = q_o * cos + q_e * sin
    ke = k_e * cos_k - k_o * sin_k
    ko = k_o * cos_k + k_e * sin_k

    # a @ b.T without materializing a transposed copy of b
    mm_t = lambda a, b: lax.dot_general(a, b, (((1,), (1,)), ((), ())),
                                        preferred_element_type=f32)

    # GQA: each KV group is projected / RoPE'd once and reused by its n_rep q-heads.
    outs = []
    for g in range(n_kv_heads):
        ke_g = ke[:, g * hh:(g + 1) * hh]
        ko_g = ko[:, g * hh:(g + 1) * hh]
        v_g = v[:, g * head_dim:(g + 1) * head_dim]
        for r in range(n_rep):
            h = g * n_rep + r                                    # repeat_interleave mapping
            s = (mm_t(qe[:, h * hh:(h + 1) * hh], ke_g) +
                 mm_t(qo[:, h * hh:(h + 1) * hh], ko_g))         # (S, S), scale pre-folded
            m = jnp.max(s, axis=-1, keepdims=True)
            p = jnp.exp(s - m)
            l = jnp.sum(p, axis=-1, keepdims=True)
            o_h = jnp.dot(p, v_g, preferred_element_type=f32)    # (S, hd)
            # approx reciprocal hits the EUP slot (free); use approx=False for training.
            outs.append(o_h * pl.reciprocal(l, approx=True))

    # Single fused output projection: concat heads along lanes, one matmul.
    o_cat = jnp.concatenate(outs, axis=-1)                       # (S, H*hd)
    out = jnp.dot(o_cat, wo_ref[...].astype(f32), preferred_element_type=f32)
    o_ref[...] = out.astype(o_ref.dtype)                         # (S, dim)


# ------------------------------ wrapper ----------------------------------------
def _even_odd_perm(n_heads, head_dim):
    """Column permutation: new order = [even elems | odd elems] x head x freq."""
    hh = head_dim // 2
    idx = []
    for half in (0, 1):
        for h in range(n_heads):
            for i in range(hh):
                idx.append(h * head_dim + 2 * i + half)
    return np.asarray(idx, np.int32)


def fused_attention(x, weights, input_pos):
    """x: (B, S, dim); weights in nn.Linear (out_features, in_features) layout."""
    B, S, dim = x.shape
    wq, wk, wv, wo = weights
    scale = 1.0 / math.sqrt(HEAD_DIM)

    # Weight prep (pure parameter reshuffle; cacheable in practice).
    wq_t = (wq.T * scale)[:, _even_odd_perm(N_HEADS, HEAD_DIM)]      # (dim, H*hd)
    wk_t = wk.T[:, _even_odd_perm(N_KV_HEADS, HEAD_DIM)]             # (dim, Hkv*hd)
    wv_t = wv.T                                                      # (dim, Hkv*hd)
    w_qkv = jnp.concatenate([wq_t, wk_t, wv_t], axis=1)              # (dim, (H+2Hkv)*hd)
    wo_t = wo.T                                                      # (H*hd, dim)

    # Packed RoPE table [cos || sin], batch-independent: lane j -> theta_{j % hh}.
    inv_freq = 1.0 / (ROPE_THETA ** (jnp.arange(0, HEAD_DIM, 2, dtype=jnp.float32)
                                     / HEAD_DIM))                    # (hh,)
    theta = input_pos.astype(jnp.float32)[:, None] * inv_freq[None, :]  # (S, hh)
    cos = jnp.tile(jnp.cos(theta), (1, N_HEADS))                     # (S, H*hh)
    sin = jnp.tile(jnp.sin(theta), (1, N_HEADS))
    rope_tab = jnp.concatenate([cos, sin], axis=1)                   # (S, H*hd)

    kernel = functools.partial(_attention_kernel, n_heads=N_HEADS,
                               n_kv_heads=N_KV_HEADS, head_dim=HEAD_DIM)

    out = pl.pallas_call(
        kernel,
        out_shape=jax.ShapeDtypeStruct((B, S, dim), x.dtype),
        grid=(B,),
        in_specs=[
            pl.BlockSpec((None, S, dim), lambda b: (b, 0, 0)),
            pl.BlockSpec(w_qkv.shape, lambda b: (0, 0)),
            pl.BlockSpec(wo_t.shape, lambda b: (0, 0)),
            pl.BlockSpec(rope_tab.shape, lambda b: (0, 0)),
        ],
        out_specs=pl.BlockSpec((None, S, dim), lambda b: (b, 0, 0)),
        compiler_params=pltpu.CompilerParams(
            dimension_semantics=("parallel",)),   # v7x: one batch per TensorCore
    )(x, w_qkv, wo_t, rope_tab)
    return out


# ------------------------------ pure-JAX reference -----------------------------
def build_rope(max_seq_len, dim, theta):
    inv_freq = 1.0 / (theta ** (jnp.arange(0, dim, 2, dtype=jnp.float32) / dim))
    seq = jnp.arange(max_seq_len, dtype=jnp.float32)
    freqs = jnp.einsum("i,j->ij", seq, inv_freq)
    emb = jnp.stack((freqs, freqs), axis=-1).reshape(freqs.shape[0], -1)
    cos = jnp.cos(emb)[None, :, None, :]
    sin = jnp.sin(emb)[None, :, None, :]
    return cos, sin


def rotate_half(x):
    xr = x.reshape(*x.shape[:-1], -1, 2)
    x1 = xr[..., 0]
    x2 = xr[..., 1]
    return jnp.stack((-x2, x1), axis=-1).reshape(x.shape)


def apply_rope(q, k, cos, sin, input_pos):
    cos_p = cos[:, input_pos]
    sin_p = sin[:, input_pos]
    xq = q * cos_p + rotate_half(q) * sin_p
    xk = k * cos_p + rotate_half(k) * sin_p
    return xq.astype(q.dtype), xk.astype(k.dtype)


def reference_forward(x, weights, input_pos):
    """Mirrors Attention.forward (attn_type='self', mask=None -> is_causal=False)."""
    B, S, _ = x.shape
    wq, wk, wv, wo = weights
    cos, sin = build_rope(MAX_SEQ_LEN, HEAD_DIM, ROPE_THETA)
    xq = (x @ wq.T).reshape(B, S, N_HEADS, HEAD_DIM)
    xk = (x @ wk.T).reshape(B, S, N_KV_HEADS, HEAD_DIM)
    xv = (x @ wv.T).reshape(B, S, N_KV_HEADS, HEAD_DIM)
    xq, xk = apply_rope(xq, xk, cos, sin, input_pos)
    xq = xq.transpose(0, 2, 1, 3)
    xk = xk.transpose(0, 2, 1, 3)
    xv = xv.transpose(0, 2, 1, 3)
    cache_k = jnp.zeros((MAX_BATCH, N_KV_HEADS, MAX_SEQ_LEN, HEAD_DIM), x.dtype)
    cache_v = jnp.zeros_like(cache_k)
    cache_k = cache_k.at[:B, :, input_pos].set(xk)
    cache_v = cache_v.at[:B, :, input_pos].set(xv)
    keys = jnp.repeat(cache_k[:B], N_REP, axis=1)     # repeat_interleave semantics
    vals = jnp.repeat(cache_v[:B], N_REP, axis=1)
    scale = 1.0 / math.sqrt(HEAD_DIM)
    s = jnp.einsum("bhqd,bhkd->bhqk", xq, keys) * scale
    p = jax.nn.softmax(s, axis=-1)
    out = jnp.einsum("bhqk,bhkd->bhqd", p, vals)
    out = out.transpose(0, 2, 1, 3).reshape(B, S, N_HEADS * HEAD_DIM)
    return out @ wo.T


# ---------------------------------- main ---------------------------------------
if __name__ == "__main__":
    key = jax.random.PRNGKey(0)
    k_x, k_q, k_k, k_v, k_o = jax.random.split(key, 5)

    B, S = 2, MAX_SEQ_LEN
    x = jax.random.normal(k_x, (B, S, DIM), dtype=DTYPE)

    # Deterministic "nn.Linear" weights (out_features, in_features), bias=False.
    wq = jax.random.normal(k_q, (N_HEADS * HEAD_DIM, DIM), dtype=DTYPE) * 0.05
    wk = jax.random.normal(k_k, (N_KV_HEADS * HEAD_DIM, DIM), dtype=DTYPE) * 0.05
    wv = jax.random.normal(k_v, (N_KV_HEADS * HEAD_DIM, DIM), dtype=DTYPE) * 0.05
    wo = jax.random.normal(k_o, (DIM, N_HEADS * HEAD_DIM), dtype=DTYPE) * 0.05
    weights = (wq, wk, wv, wo)

    input_pos = jnp.arange(S, dtype=jnp.int32)

    out = jax.jit(fused_attention)(x, weights, input_pos)
    out = jax.block_until_ready(out)

    ref = reference_forward(x, weights, input_pos)
    # tolerance slightly loosened for the EUP approximate reciprocal in softmax
    np.testing.assert_allclose(np.asarray(out), np.asarray(ref), rtol=2e-3, atol=2e-3)

    print("KERNEL_OK")
</pallas_src>

<mosaic_0001>
module attributes {stable_mosaic.version = 11 : i64} {
  func.func @_attention_kernel(%arg0: i32, %arg1: memref<1x8x32xf32, #tpu.memory_space<vmem>>, %arg2: memref<32x64xf32, #tpu.memory_space<vmem>>, %arg3: memref<32x32xf32, #tpu.memory_space<vmem>>, %arg4: memref<8x32xf32, #tpu.memory_space<vmem>>, %arg5: memref<1x8x32xf32, #tpu.memory_space<vmem>>) attributes {dimension_semantics = [#tpu.dimension_semantics<parallel>], iteration_bounds = array<i64: 2>, scalar_prefetch = 0 : i64, scratch_operands = 0 : i64, tpu.core_type = #tpu.core_type<tc>, window_params = [{transform_indices = @transform_0, window_bounds = array<i64: 1, 8, 32>}, {pipeline_mode = #tpu.pipeline_mode<synchronous>, transform_indices = @transform_1, window_bounds = array<i64: 32, 64>}, {pipeline_mode = #tpu.pipeline_mode<synchronous>, transform_indices = @transform_2, window_bounds = array<i64: 32, 32>}, {pipeline_mode = #tpu.pipeline_mode<synchronous>, transform_indices = @transform_3, window_bounds = array<i64: 8, 32>}, {transform_indices = @transform_4, window_bounds = array<i64: 1, 8, 32>}]} {
    %c0 = arith.constant 0 : index
    %c0_0 = arith.constant 0 : index
    %c0_1 = arith.constant 0 : index
    %0 = vector.load %arg1[%c0, %c0_0, %c0_1] : memref<1x8x32xf32, #tpu.memory_space<vmem>>, vector<1x8x32xf32>
    %1 = vector.shape_cast %0 : vector<1x8x32xf32> to vector<8x32xf32>
    %c0_2 = arith.constant 0 : index
    %c0_3 = arith.constant 0 : index
    %2 = vector.load %arg2[%c0_2, %c0_3] : memref<32x64xf32, #tpu.memory_space<vmem>>, vector<32x64xf32>
    %cst = arith.constant dense<0.000000e+00> : vector<8x64xf32>
    %3 = tpu.matmul %1, %2, %cst {dimension_numbers = #tpu.dot_dimension_numbers<[1], [0], [0], [1], [0, 0, 1, 1], [], []>} : vector<8x32xf32>, vector<32x64xf32>, vector<8x64xf32> -> vector<8x64xf32>
    %4 = vector.extract_strided_slice %3 {offsets = [0, 0], sizes = [8, 16], strides = [1, 1]} : vector<8x64xf32> to vector<8x16xf32>
    %5 = vector.extract_strided_slice %3 {offsets = [0, 16], sizes = [8, 16], strides = [1, 1]} : vector<8x64xf32> to vector<8x16xf32>
    %6 = vector.extract_strided_slice %3 {offsets = [0, 32], sizes = [8, 8], strides = [1, 1]} : vector<8x64xf32> to vector<8x8xf32>
    %7 = vector.extract_strided_slice %3 {offsets = [0, 40], sizes = [8, 8], strides = [1, 1]} : vector<8x64xf32> to vector<8x8xf32>
    %8 = vector.extract_strided_slice %3 {offsets = [0, 48], sizes = [8, 16], strides = [1, 1]} : vector<8x64xf32> to vector<8x16xf32>
    %c0_4 = arith.constant 0 : index
    %c0_5 = arith.constant 0 : index
    %9 = vector.load %arg4[%c0_4, %c0_5] : memref<8x32xf32, #tpu.memory_space<vmem>>, vector<8x16xf32>
    %c0_6 = arith.constant 0 : index
    %c16 = arith.constant 16 : index
    %10 = vector.load %arg4[%c0_6, %c16] : memref<8x32xf32, #tpu.memory_space<vmem>>, vector<8x16xf32>
    %11 = vector.extract_strided_slice %9 {offsets = [0, 0], sizes = [8, 8], strides = [1, 1]} : vector<8x16xf32> to vector<8x8xf32>
    %12 = vector.extract_strided_slice %10 {offsets = [0, 0], sizes = [8, 8], strides = [1, 1]} : vector<8x16xf32> to vector<8x8xf32>
    %13 = arith.mulf %4, %9 : vector<8x16xf32>
    %14 = arith.mulf %5, %10 : vector<8x16xf32>
    %15 = arith.subf %13, %14 : vector<8x16xf32>
    %16 = arith.mulf %5, %9 : vector<8x16xf32>
    %17 = arith.mulf %4, %10 : vector<8x16xf32>
    %18 = arith.addf %16, %17 : vector<8x16xf32>
    %19 = arith.mulf %6, %11 : vector<8x8xf32>
    %20 = arith.mulf %7, %12 : vector<8x8xf32>
    %21 = arith.subf %19, %20 : vector<8x8xf32>
    %22 = arith.mulf %7, %11 : vector<8x8xf32>
    %23 = arith.mulf %6, %12 : vector<8x8xf32>
    %24 = arith.addf %22, %23 : vector<8x8xf32>
    %25 = vector.extract_strided_slice %21 {offsets = [0, 0], sizes = [8, 4], strides = [1, 1]} : vector<8x8xf32> to vector<8x4xf32>
    %26 = vector.extract_strided_slice %24 {offsets = [0, 0], sizes = [8, 4], strides = [1, 1]} : vector<8x8xf32> to vector<8x4xf32>
    %27 = vector.extract_strided_slice %8 {offsets = [0, 0], sizes = [8, 8], strides = [1, 1]} : vector<8x16xf32> to vector<8x8xf32>
    %28 = vector.extract_strided_slice %15 {offsets = [0, 0], sizes = [8, 4], strides = [1, 1]} : vector<8x16xf32> to vector<8x4xf32>
    %cst_7 = arith.constant dense<0.000000e+00> : vector<8x8xf32>
    %29 = tpu.matmul %28, %25, %cst_7 {dimension_numbers = #tpu.dot_dimension_numbers<[1], [1], [0], [0], [0, 0, 1, 0], [], []>} : vector<8x4xf32>, vector<8x4xf32>, vector<8x8xf32> -> vector<8x8xf32>
    %30 = vector.extract_strided_slice %18 {offsets = [0, 0], sizes = [8, 4], strides = [1, 1]} : vector<8x16xf32> to vector<8x4xf32>
    %cst_8 = arith.constant dense<0.000000e+00> : vector<8x8xf32>
    %31 = tpu.matmul %30, %26, %cst_8 {dimension_numbers = #tpu.dot_dimension_numbers<[1], [1], [0], [0], [0, 0, 1, 0], [], []>} : vector<8x4xf32>, vector<8x4xf32>, vector<8x8xf32> -> vector<8x8xf32>
    %32 = arith.addf %29, %31 : vector<8x8xf32>
    %cst_9 = arith.constant dense<0xFF800000> : vector<8xf32>
    %33 = vector.multi_reduction <maximumf>, %32, %cst_9 [1] : vector<8x8xf32> to vector<8xf32>
    %34 = vector.shape_cast %33 : vector<8xf32> to vector<8x1xf32>
    %35 = vector.broadcast %34 : vector<8x1xf32> to vector<8x8xf32>
    %36 = arith.subf %32, %35 : vector<8x8xf32>
    %37 = math.exp %36 : vector<8x8xf32>
    %cst_10 = arith.constant dense<0.000000e+00> : vector<8xf32>
    %38 = vector.multi_reduction <add>, %37, %cst_10 [1] : vector<8x8xf32> to vector<8xf32>
    %39 = vector.shape_cast %38 : vector<8xf32> to vector<8x1xf32>
    %cst_11 = arith.constant dense<0.000000e+00> : vector<8x8xf32>
    %40 = tpu.matmul %37, %27, %cst_11 {dimension_numbers = #tpu.dot_dimension_numbers<[1], [0], [0], [1], [0, 0, 1, 1], [], []>} : vector<8x8xf32>, vector<8x8xf32>, vector<8x8xf32> -> vector<8x8xf32>
    %41 = tpu.reciprocal %39 {approx = true} : vector<8x1xf32> -> vector<8x1xf32>
    %42 = vector.broadcast %41 : vector<8x1xf32> to vector<8x8xf32>
    %43 = arith.mulf %40, %42 : vector<8x8xf32>
    %44 = vector.extract_strided_slice %15 {offsets = [0, 4], sizes = [8, 4], strides = [1, 1]} : vector<8x16xf32> to vector<8x4xf32>
    %cst_12 = arith.constant dense<0.000000e+00> : vector<8x8xf32>
    %45 = tpu.matmul %44, %25, %cst_12 {dimension_numbers = #tpu.dot_dimension_numbers<[1], [1], [0], [0], [0, 0, 1, 0], [], []>} : vector<8x4xf32>, vector<8x4xf32>, vector<8x8xf32> -> vector<8x8xf32>
    %46 = vector.extract_strided_slice %18 {offsets = [0, 4], sizes = [8, 4], strides = [1, 1]} : vector<8x16xf32> to vector<8x4xf32>
    %cst_13 = arith.constant dense<0.000000e+00> : vector<8x8xf32>
    %47 = tpu.matmul %46, %26, %cst_13 {dimension_numbers = #tpu.dot_dimension_numbers<[1], [1], [0], [0], [0, 0, 1, 0], [], []>} : vector<8x4xf32>, vector<8x4xf32>, vector<8x8xf32> -> vector<8x8xf32>
    %48 = arith.addf %45, %47 : vector<8x8xf32>
    %cst_14 = arith.constant dense<0xFF800000> : vector<8xf32>
    %49 = vector.multi_reduction <maximumf>, %48, %cst_14 [1] : vector<8x8xf32> to vector<8xf32>
    %50 = vector.shape_cast %49 : vector<8xf32> to vector<8x1xf32>
    %51 = vector.broadcast %50 : vector<8x1xf32> to vector<8x8xf32>
    %52 = arith.subf %48, %51 : vector<8x8xf32>
    %53 = math.exp %52 : vector<8x8xf32>
    %cst_15 = arith.constant dense<0.000000e+00> : vector<8xf32>
    %54 = vector.multi_reduction <add>, %53, %cst_15 [1] : vector<8x8xf32> to vector<8xf32>
    %55 = vector.shape_cast %54 : vector<8xf32> to vector<8x1xf32>
    %cst_16 = arith.constant dense<0.000000e+00> : vector<8x8xf32>
    %56 = tpu.matmul %53, %27, %cst_16 {dimension_numbers = #tpu.dot_dimension_numbers<[1], [0], [0], [1], [0, 0, 1, 1], [], []>} : vector<8x8xf32>, vector<8x8xf32>, vector<8x8xf32> -> vector<8x8xf32>
    %57 = tpu.reciprocal %55 {approx = true} : vector<8x1xf32> -> vector<8x1xf32>
    %58 = vector.broadcast %57 : vector<8x1xf32> to vector<8x8xf32>
    %59 = arith.mulf %56, %58 : vector<8x8xf32>
    %60 = vector.extract_strided_slice %21 {offsets = [0, 4], sizes = [8, 4], strides = [1, 1]} : vector<8x8xf32> to vector<8x4xf32>
    %61 = vector.extract_strided_slice %24 {offsets = [0, 4], sizes = [8, 4], strides = [1, 1]} : vector<8x8xf32> to vector<8x4xf32>
    %62 = vector.extract_strided_slice %8 {offsets = [0, 8], sizes = [8, 8], strides = [1, 1]} : vector<8x16xf32> to vector<8x8xf32>
    %63 = vector.extract_strided_slice %15 {offsets = [0, 8], sizes = [8, 4], strides = [1, 1]} : vector<8x16xf32> to vector<8x4xf32>
    %cst_17 = arith.constant dense<0.000000e+00> : vector<8x8xf32>
    %64 = tpu.matmul %63, %60, %cst_17 {dimension_numbers = #tpu.dot_dimension_numbers<[1], [1], [0], [0], [0, 0, 1, 0], [], []>} : vector<8x4xf32>, vector<8x4xf32>, vector<8x8xf32> -> vector<8x8xf32>
    %65 = vector.extract_strided_slice %18 {offsets = [0, 8], sizes = [8, 4], strides = [1, 1]} : vector<8x16xf32> to vector<8x4xf32>
    %cst_18 = arith.constant dense<0.000000e+00> : vector<8x8xf32>
    %66 = tpu.matmul %65, %61, %cst_18 {dimension_numbers = #tpu.dot_dimension_numbers<[1], [1], [0], [0], [0, 0, 1, 0], [], []>} : vector<8x4xf32>, vector<8x4xf32>, vector<8x8xf32> -> vector<8x8xf32>
    %67 = arith.addf %64, %66 : vector<8x8xf32>
    %cst_19 = arith.constant dense<0xFF800000> : vector<8xf32>
    %68 = vector.multi_reduction <maximumf>, %67, %cst_19 [1] : vector<8x8xf32> to vector<8xf32>
    %69 = vector.shape_cast %68 : vector<8xf32> to vector<8x1xf32>
    %70 = vector.broadcast %69 : vector<8x1xf32> to vector<8x8xf32>
    %71 = arith.subf %67, %70 : vector<8x8xf32>
    %72 = math.exp %71 : vector<8x8xf32>
    %cst_20 = arith.constant dense<0.000000e+00> : vector<8xf32>
    %73 = vector.multi_reduction <add>, %72, %cst_20 [1] : vector<8x8xf32> to vector<8xf32>
    %74 = vector.shape_cast %73 : vector<8xf32> to vector<8x1xf32>
    %cst_21 = arith.constant dense<0.000000e+00> : vector<8x8xf32>
    %75 = tpu.matmul %72, %62, %cst_21 {dimension_numbers = #tpu.dot_dimension_numbers<[1], [0], [0], [1], [0, 0, 1, 1], [], []>} : vector<8x8xf32>, vector<8x8xf32>, vector<8x8xf32> -> vector<8x8xf32>
    %76 = tpu.reciprocal %74 {approx = true} : vector<8x1xf32> -> vector<8x1xf32>
    %77 = vector.broadcast %76 : vector<8x1xf32> to vector<8x8xf32>
    %78 = arith.mulf %75, %77 : vector<8x8xf32>
    %79 = vector.extract_strided_slice %15 {offsets = [0, 12], sizes = [8, 4], strides = [1, 1]} : vector<8x16xf32> to vector<8x4xf32>
    %cst_22 = arith.constant dense<0.000000e+00> : vector<8x8xf32>
    %80 = tpu.matmul %79, %60, %cst_22 {dimension_numbers = #tpu.dot_dimension_numbers<[1], [1], [0], [0], [0, 0, 1, 0], [], []>} : vector<8x4xf32>, vector<8x4xf32>, vector<8x8xf32> -> vector<8x8xf32>
    %81 = vector.extract_strided_slice %18 {offsets = [0, 12], sizes = [8, 4], strides = [1, 1]} : vector<8x16xf32> to vector<8x4xf32>
    %cst_23 = arith.constant dense<0.000000e+00> : vector<8x8xf32>
    %82 = tpu.matmul %81, %61, %cst_23 {dimension_numbers = #tpu.dot_dimension_numbers<[1], [1], [0], [0], [0, 0, 1, 0], [], []>} : vector<8x4xf32>, vector<8x4xf32>, vector<8x8xf32> -> vector<8x8xf32>
    %83 = arith.addf %80, %82 : vector<8x8xf32>
    %cst_24 = arith.constant dense<0xFF800000> : vector<8xf32>
    %84 = vector.multi_reduction <maximumf>, %83, %cst_24 [1] : vector<8x8xf32> to vector<8xf32>
    %85 = vector.shape_cast %84 : vector<8xf32> to vector<8x1xf32>
    %86 = vector.broadcast %85 : vector<8x1xf32> to vector<8x8xf32>
    %87 = arith.subf %83, %86 : vector<8x8xf32>
    %88 = math.exp %87 : vector<8x8xf32>
    %cst_25 = arith.constant dense<0.000000e+00> : vector<8xf32>
    %89 = vector.multi_reduction <add>, %88, %cst_25 [1] : vector<8x8xf32> to vector<8xf32>
    %90 = vector.shape_cast %89 : vector<8xf32> to vector<8x1xf32>
    %cst_26 = arith.constant dense<0.000000e+00> : vector<8x8xf32>
    %91 = tpu.matmul %88, %62, %cst_26 {dimension_numbers = #tpu.dot_dimension_numbers<[1], [0], [0], [1], [0, 0, 1, 1], [], []>} : vector<8x8xf32>, vector<8x8xf32>, vector<8x8xf32> -> vector<8x8xf32>
    %92 = tpu.reciprocal %90 {approx = true} : vector<8x1xf32> -> vector<8x1xf32>
    %93 = vector.broadcast %92 : vector<8x1xf32> to vector<8x8xf32>
    %94 = arith.mulf %91, %93 : vector<8x8xf32>
    %95 = tpu.concatenate %43, %59, %78, %94 in 1 : vector<8x8xf32>, vector<8x8xf32>, vector<8x8xf32>, vector<8x8xf32> -> vector<8x32xf32>
    %c0_27 = arith.constant 0 : index
    %c0_28 = arith.constant 0 : index
    %96 = vector.load %arg3[%c0_27, %c0_28] : memref<32x32xf32, #tpu.memory_space<vmem>>, vector<32x32xf32>
    %cst_29 = arith.constant dense<0.000000e+00> : vector<8x32xf32>
    %97 = tpu.matmul %95, %96, %cst_29 {dimension_numbers = #tpu.dot_dimension_numbers<[1], [0], [0], [1], [0, 0, 1, 1], [], []>} : vector<8x32xf32>, vector<32x32xf32>, vector<8x32xf32> -> vector<8x32xf32>
    %c0_30 = arith.constant 0 : index
    %c0_31 = arith.constant 0 : index
    %c0_32 = arith.constant 0 : index
    %98 = vector.load %arg5[%c0_30, %c0_31, %c0_32] : memref<1x8x32xf32, #tpu.memory_space<vmem>>, vector<1x8x32xf32>
    %99 = vector.shape_cast %98 : vector<1x8x32xf32> to vector<8x32xf32>
    %100 = vector.shape_cast %97 : vector<8x32xf32> to vector<1x8x32xf32>
    tpu.vector_store %arg5[%c0_30, %c0_31, %c0_32], %100 {strides = array<i32>} : memref<1x8x32xf32, #tpu.memory_space<vmem>>, vector<1x8x32xf32>,
    return
  }
  func.func @transform_0(%arg0: i32) -> (i32, i32, i32) {
    %c0_i32 = arith.constant 0 : i32
    %c0_i32_0 = arith.constant 0 : i32
    %c0_i32_1 = arith.constant 0 : i32
    return %arg0, %c0_i32, %c0_i32_0 : i32, i32, i32
  }
  func.func @transform_1(%arg0: i32) -> (i32, i32) {
    %c0_i32 = arith.constant 0 : i32
    %c0_i32_0 = arith.constant 0 : i32
    %c0_i32_1 = arith.constant 0 : i32
    return %c0_i32, %c0_i32_0 : i32, i32
  }
  func.func @transform_2(%arg0: i32) -> (i32, i32) {
    %c0_i32 = arith.constant 0 : i32
    %c0_i32_0 = arith.constant 0 : i32
    %c0_i32_1 = arith.constant 0 : i32
    return %c0_i32, %c0_i32_0 : i32, i32
  }
  func.func @transform_3(%arg0: i32) -> (i32, i32) {
    %c0_i32 = arith.constant 0 : i32
    %c0_i32_0 = arith.constant 0 : i32
    %c0_i32_1 = arith.constant 0 : i32
    return %c0_i32, %c0_i32_0 : i32, i32
  }
  func.func @transform_4(%arg0: i32) -> (i32, i32, i32) {
    %c0_i32 = arith.constant 0 : i32
    %c0_i32_0 = arith.constant 0 : i32
    %c0_i32_1 = arith.constant 0 : i32
    return %arg0, %c0_i32, %c0_i32_0 : i32, i32, i32
  }
}

</mosaic_0001>

<llo_original>
// kernel: fused_attention.1
$region0: #{fused_attention.1}
  #allocation0 [shape = 'u32[]', space=smem, size = 0x4, offset = 0x4, fixed_abs, tag = 'smem constant byte address 0x4 - core index']
  #allocation1 [shape = 'u32[144,128]{1,0:T(1,128)}', space=vmem, size = 0x12000, scoped, tag = 'internal scratch']
  %s0 = inlined_call_operand.vmem [shape: f32[2,8,32], index: 0, kind: input, shape index: {}]
  %s1 = inlined_call_operand.vmem [shape: f32[32,64], index: 1, kind: input, shape index: {}]
  %s2 = inlined_call_operand.vmem [shape: f32[32,32], index: 2, kind: input, shape index: {}]
  %s3 = inlined_call_operand.vmem [shape: f32[8,32], index: 3, kind: input, shape index: {}]
  %s4 = inlined_call_operand.hbm [shape: f32[2,8,32], index: 4, kind: output, shape index: {}]
  %s5 = sld [smem:[#allocation0]]
  $region49: #{fused_attention.1} parent=0
    _
  %s7 = ssub.s32 1, %s5
  %s8 = scalar_select 0, %s7, %s5
  $region1: #{fused_attention.1} parent=0
    #allocation2 [shape = 'u8[8192]{0}', space=vmem, size = 0x2000, scoped, tag = 'output window, operand 0']
    #allocation3 [shape = 's32[2]{0}', space=sflag, size = 0x8, scoped, tag = 'scoped memory for fused_attention.1']
    %9 = vsyncpa [#allocation3], 0
    %s10 = scalar_lea.sflag [#allocation3], 1
    %11 = vsyncpa %s10, 0
    loop: start=0, step=1, limit=4
    $region2: #{fused_attention.1} parent=1 // loop_pre_header
      _
    $region3: #{fused_attention.1} parent=1 // loop_header
      %s13 = sphi 0, %s17
      %p14 = scmp.ge.s32.totalorder %s13, 4
      %s23 = sphi 0, %s25
      %s26 = sphi 0, %s23
      %s27 = sphi 0, %s26
      %s43 = sphi 0, %s27
      %s47 = sphi 0, %s47
      %s49 = sphi 0, %s47
      %s50 = sphi 0, %s49
      %s64 = sphi 0, %s50
      %s68 = sphi 0, %s68
      %s70 = sphi 0, %s68
      %s71 = sphi 0, %s70
      %s85 = sphi 0, %s71
      %s89 = sphi 0, %s89
      %s91 = sphi 0, %s89
      %s92 = sphi 0, %s91
      %s106 = sphi 0, %s92
      %s112 = sphi 0, %s114
      %s115 = sphi 0, %s112
      %s116 = sphi 0, %s115
      %s132 = sphi 0, %s116
    $region4: #{fused_attention.1} parent=1 // loop_header_branch
      %16 = sbr.rel (%p14) target = $region8
    $region5: #{fused_attention.1} parent=1 // loop_body
      %s18 = ssub.s32 %s13, 1
      %s19 = ssub.s32 %s13, 2
      %s20 = sadd.s32 %s13, 1
      %s21 = ssub.s32 %s13, %s20
      %p22 = scmp.eq.s32.totalorder %s21, 0
      %s24 = sadd.s32 %s23, 1
      %s25 = scalar_select %p22, %s23, %s24
      %p28 = pneg %p22
      %p29 = scmp.eq.s32.totalorder %s13, 1
      %p30 = por %p28, %p29
      %p31 = scmp.ne.s32.totalorder %s23, %s26
      %p32 = scmp.eq.s32.totalorder %s13, 0
      %p33 = por %p31, %p32
      %p34 = scmp.ne.s32.totalorder %s23, %s26
      %p35 = scmp.eq.s32.totalorder %s18, 1
      %p36 = por %p34, %p35
      %p37 = scmp.ne.s32.totalorder %s26, %s27
      %p38 = scmp.eq.s32.totalorder %s18, 0
      %p39 = por %p37, %p38
      %p40 = scmp.ne.s32.totalorder %s26, %s27
      %p41 = scmp.eq.s32.totalorder %s19, 1
      %p42 = por %p40, %p41
      %p44 = scmp.ne.s32.totalorder %s27, %s43
      %p45 = scmp.eq.s32.totalorder %s19, 0
      %p46 = por %p44, %p45
      %s48 = sadd.s32 %s47, 1
      %p51 = scmp.eq.s32.totalorder %s13, 1
      %p52 = scmp.ne.s32.totalorder %s47, %s49
      %p53 = scmp.eq.s32.totalorder %s13, 0
      %p54 = por %p52, %p53
      %p55 = scmp.ne.s32.totalorder %s47, %s49
      %p56 = scmp.eq.s32.totalorder %s18, 1
      %p57 = por %p55, %p56
      %p58 = scmp.ne.s32.totalorder %s49, %s50
      %p59 = scmp.eq.s32.totalorder %s18, 0
      %p60 = por %p58, %p59
      %p61 = scmp.ne.s32.totalorder %s49, %s50
      %p62 = scmp.eq.s32.totalorder %s19, 1
      %p63 = por %p61, %p62
      %p65 = scmp.ne.s32.totalorder %s50, %s64
      %p66 = scmp.eq.s32.totalorder %s19, 0
      %p67 = por %p65, %p66
      %s69 = sadd.s32 %s68, 1
      %p72 = scmp.eq.s32.totalorder %s13, 1
      %p73 = scmp.ne.s32.totalorder %s68, %s70
      %p74 = scmp.eq.s32.totalorder %s13, 0
      %p75 = por %p73, %p74
      %p76 = scmp.ne.s32.totalorder %s68, %s70
      %p77 = scmp.eq.s32.totalorder %s18, 1
      %p78 = por %p76, %p77
      %p79 = scmp.ne.s32.totalorder %s70, %s71
      %p80 = scmp.eq.s32.totalorder %s18, 0
      %p81 = por %p79, %p80
      %p82 = scmp.ne.s32.totalorder %s70, %s71
      %p83 = scmp.eq.s32.totalorder %s19, 1
      %p84 = por %p82, %p83
      %p86 = scmp.ne.s32.totalorder %s71, %s85
      %p87 = scmp.eq.s32.totalorder %s19, 0
      %p88 = por %p86, %p87
      %s90 = sadd.s32 %s89, 1
      %p93 = scmp.eq.s32.totalorder %s13, 1
      %p94 = scmp.ne.s32.totalorder %s89, %s91
      %p95 = scmp.eq.s32.totalorder %s13, 0
      %p96 = por %p94, %p95
      %p97 = scmp.ne.s32.totalorder %s89, %s91
      %p98 = scmp.eq.s32.totalorder %s18, 1
      %p99 = por %p97, %p98
      %p100 = scmp.ne.s32.totalorder %s91, %s92
      %p101 = scmp.eq.s32.totalorder %s18, 0
      %p102 = por %p100, %p101
      %p103 = scmp.ne.s32.totalorder %s91, %s92
      %p104 = scmp.eq.s32.totalorder %s19, 1
      %p105 = por %p103, %p104
      %p107 = scmp.ne.s32.totalorder %s92, %s106
      %p108 = scmp.eq.s32.totalorder %s19, 0
      %p109 = por %p107, %p108
      %s110 = ssub.s32 %s13, %s20
      %p111 = scmp.eq.s32.totalorder %s110, 0
      %s113 = sadd.s32 %s112, 1
      %s114 = scalar_select %p111, %s112, %s113
      %p117 = pneg %p111
      %p118 = scmp.eq.s32.totalorder %s13, 1
      %p119 = por %p117, %p118
      %p120 = scmp.ne.s32.totalorder %s112, %s115
      %p121 = scmp.eq.s32.totalorder %s13, 0
      %p122 = por %p120, %p121
      %p123 = scmp.ne.s32.totalorder %s112, %s115
      %p124 = scmp.eq.s32.totalorder %s18, 1
      %p125 = por %p123, %p124
      %p126 = scmp.ne.s32.totalorder %s115, %s116
      %p127 = scmp.eq.s32.totalorder %s18, 0
      %p128 = por %p126, %p127
      %p129 = scmp.ne.s32.totalorder %s115, %s116
      %p130 = scmp.eq.s32.totalorder %s19, 1
      %p131 = por %p129, %p130
      %p133 = scmp.ne.s32.totalorder %s116, %s132
      %p134 = scmp.eq.s32.totalorder %s19, 0
      %p135 = por %p133, %p134
      %p136 = scmp.le.s32.totalorder 1, %s13
      %p137 = scmp.lt.s32.totalorder %s13, 3
      %p138 = pnand %p136, %p137
      %p139 = pneg %p138
      // Predicated region
      $region9: #{fused_attention.1} parent=5 // pred_check
        _
      $region10: #{fused_attention.1} parent=5 // pred_check_branch
        %141 = sbr.rel (%p138) target = $region12
      $region11: #{fused_attention.1} parent=5 // pred_region
        %s142 = ssub.s32 %s13, 1
        // Predicated region
        $region13: #{fused_attention.1} parent=11 // pred_check
          %p143 = pneg %p60
        $region14: #{fused_attention.1} parent=11 // pred_check_branch
          %145 = sbr.rel (%p143) target = $region16
        $region15: #{fused_attention.1} parent=11 // pred_region
          _
        $region16: #{fused_attention.1} parent=11 // pred_fallthru
          _
        // Predicated region
        $region17: #{fused_attention.1} parent=11 // pred_check
          %p146 = pneg %p81
        $region18: #{fused_attention.1} parent=11 // pred_check_branch
          %148 = sbr.rel (%p146) target = $region20
        $region19: #{fused_attention.1} parent=11 // pred_region
          _
        $region20: #{fused_attention.1} parent=11 // pred_fallthru
          _
        // Predicated region
        $region21: #{fused_attention.1} parent=11 // pred_check
          %p149 = pneg %p102
        $region22: #{fused_attention.1} parent=11 // pred_check_branch
          %151 = sbr.rel (%p149) target = $region24
        $region23: #{fused_attention.1} parent=11 // pred_region
          _
        $region24: #{fused_attention.1} parent=11 // pred_fallthru
          _
      $region12: #{fused_attention.1} parent=5 // pred_fallthru
        _
      %p152 = scmp.lt.s32.totalorder %s13, 2
      // Predicated region
      $region25: #{fused_attention.1} parent=5 // pred_check
        %p153 = pneg %p152
      $region26: #{fused_attention.1} parent=5 // pred_check_branch
        %155 = sbr.rel (%p153) target = $region28
      $region27: #{fused_attention.1} parent=5 // pred_region
        // Predicated region
        $region29: #{fused_attention.1} parent=27 // pred_check
          %p156 = pneg %p33
        $region30: #{fused_attention.1} parent=27 // pred_check_branch
          %158 = sbr.rel (%p156) target = $region32
        $region31: #{fused_attention.1} parent=27 // pred_region
          %p159 = scmp.lt.s32.totalorder %s13, 1
          %s160 = scalar_select %p159, %s13, 1
          %s161 = smul.addr %s160, 8
          %s162 = scalar_lea.vmem %s0, %s161
        $region32: #{fused_attention.1} parent=27 // pred_fallthru
          _
      $region28: #{fused_attention.1} parent=5 // pred_fallthru
        _
      %p163 = scmp.le.s32.totalorder 1, %s13
      %p164 = scmp.lt.s32.totalorder %s13, 3
      %p165 = pnand %p163, %p164
      %p166 = pneg %p165
      // Predicated region
      $region33: #{fused_attention.1} parent=5 // pred_check
        _
      $region34: #{fused_attention.1} parent=5 // pred_check_branch
        %168 = sbr.rel (%p165) target = $region36
      $region35: #{fused_attention.1} parent=5 // pred_region
        %s169 = ssub.s32 %s13, 1
        %p170 = scmp.lt.s32.totalorder %s18, 1
        %s171 = scalar_select %p170, %s18, 1
        %s172 = smul.addr %s171, 8
        %s173 = scalar_lea.vmem %s0, %s172
        %p174 = pneg %p39
        %p175 = pneg %p36
        %p176 = pneg %p60
        %p177 = pneg %p57
        %p178 = pneg %p81
        %p179 = pneg %p78
        %p180 = pneg %p102
        %p181 = pneg %p99
        %p182 = pneg %p128
        %p183 = pneg %p125
        %s184 = sand.u32 %s115, 1
        %s185 = scalar_lea.sflag [#allocation3], %s184
        %s186 = sand.u32 %s115, 1
        %s187 = smul.addr %s186, 8
        %s188 = scalar_lea.vmem [#allocation2], %s187
        %p189 = scmp.lt.s32.totalorder %s18, 1
        %s190 = scalar_select %p189, %s18, 1
        %s191 = smul.addr %s190, 8
        %s192 = scalar_lea.vmem %s0, %s191
        %v193 = vld [vmem:[%s192] sm:$0xff]
        %v194 = vld [vmem:[%s1] sm:$0xff]
        %v195 = vld [vmem:[%s1 + $0x8] sm:$0xff]
        %v196 = vld [vmem:[%s1 + $0x10] sm:$0xff]
        %v197 = vld [vmem:[%s1 + $0x18] sm:$0xff]
        %vm198 = vcmask 261120
        %v200 = vsel %vm198, %v193, 0
        %202 = vmatprep.subr.mxu0 0.0
        %203 = vmatpush1.msra.mxu0 0.0
        %204 = vmatprep.subr.mxu0 0.0
        %205 = vmatpush1.msra.mxu0 0.0
        %206 = vmatprep.subr.mxu0 0.0
        %207 = vmatpush1.msra.mxu0 0.0
        %208 = vmatprep.subr.mxu0 0.0
        %209 = vmatpush1.msra.mxu0 0.0
        %210 = vmatprep.subr.mxu0 0.0
        %211 = vmatpush1.msra.mxu0 0.0
        %212 = vmatprep.subr.mxu0 0.0
        %213 = vmatpush1.msra.mxu0 0.0
        %214 = vmatprep.subr.mxu0 0.0
        %215 = vmatpush1.msra.mxu0 0.0
        %216 = vmatprep.subr.mxu0 0.0
        %217 = vmatpush1.msra.mxu0 0.0
        %218 = vmatprep.subr.mxu0 0.0
        %219 = vmatpush1.msra.mxu0 0.0
        %220 = vmatprep.subr.mxu0 0.0
        %221 = vmatpush1.msra.mxu0 0.0
        %222 = vmatprep.subr.mxu0 0.0
        %223 = vmatpush1.msra.mxu0 0.0
        %224 = vmatprep.subr.mxu0 0.0
        %225 = vmatpush1.msra.mxu0 0.0
        %226 = vmatprep.subr.mxu0 0.0
        %227 = vmatpush1.msra.mxu0 %v197
        %228 = vmatprep.subr.mxu0 0.0
        %229 = vmatpush1.msra.mxu0 %v196
        %230 = vmatprep.subr.mxu0 0.0
        %231 = vmatpush1.msra.mxu0 %v195
        %232 = vmatprep.subr.mxu0 0.0
        %233 = vmatpush1.msra.mxu0 %v194
        %234 = vmatprep.subr.mxu0 0.0
        %235 = vmatpush2.msra.mxu0 0.0
        %236 = vmatprep.subr.mxu0 0.0
        %237 = vmatpush2.msra.mxu0 0.0
        %238 = vmatprep.subr.mxu0 0.0
        %239 = vmatpush2.msra.mxu0 0.0
        %240 = vmatprep.subr.mxu0 0.0
        %241 = vmatpush2.msra.mxu0 0.0
        %242 = vmatprep.subr.mxu0 0.0
        %243 = vmatpush2.msra.mxu0 0.0
        %244 = vmatprep.subr.mxu0 0.0
        %245 = vmatpush2.msra.mxu0 0.0
        %246 = vmatprep.subr.mxu0 0.0
        %247 = vmatpush2.msra.mxu0 0.0
        %248 = vmatprep.subr.mxu0 0.0
        %249 = vmatpush2.msra.mxu0 0.0
        %250 = vmatprep.subr.mxu0 0.0
        %251 = vmatpush2.msra.mxu0 0.0
        %252 = vmatprep.subr.mxu0 0.0
        %253 = vmatpush2.msra.mxu0 0.0
        %254 = vmatprep.subr.mxu0 0.0
        %255 = vmatpush2.msra.mxu0 0.0
        %256 = vmatprep.subr.mxu0 0.0
        %257 = vmatpush2.msra.mxu0 0.0
        %258 = vmatprep.subr.mxu0 0.0
        %259 = vmatpush2.msra.mxu0 0.0
        %260 = vmatprep.subr.mxu0 0.0
        %261 = vmatpush2.msra.mxu0 0.0
        %262 = vmatprep.subr.mxu0 0.0
        %263 = vmatpush2.msra.mxu0 0.0
        %264 = vmatprep.subr.mxu0 0.0
        %265 = vmatpush2.msra.mxu0 0.0
        %266 = vmatprep.mubr.f32.mxu0 0.0
        %267 = vmatmul.mubr.f32.gmra.mxu0 %v200
        %v268 = vpop.f32.mrf.mxu0
        %v269 = vadd.f32 0.0, %v268
        %v270 = vpop.f32.mrf.mxu0
        %271 = vdwg.mxu0
        %v272 = vld [vmem:[%s3] sm:$0xff]
        %v273 = vmul.f32 %v269, %v272
        %275 = vrot.lane.b32.xlu0 %v273, 112
        %v276 = vpop.permute.xlu0 %275
        %v278 = vsub.f32 %v273, %v276
        %280 = vrot.lane.b32.xlu0 %v272, 16
        %v281 = vpop.permute.xlu0 %280
        %v283 = vmul.f32 %v269, %v281
        %284 = vrot.lane.b32.xlu0 %v272, 112
        %v285 = vpop.permute.xlu0 %284
        %v287 = vmul.f32 %v269, %v285
        %289 = vrot.lane.b32.xlu0 %v287, 16
        %v290 = vpop.permute.xlu0 %289
        %v292 = vadd.f32 %v283, %v290
        %293 = vrot.lane.b32.xlu0 %v272, 32
        %v294 = vpop.permute.xlu0 %293
        %v296 = vmul.f32 %v269, %v294
        %297 = vrot.lane.b32.xlu0 %v272, 24
        %v298 = vpop.permute.xlu0 %297
        %v300 = vmul.f32 %v269, %v298
        %302 = vrot.lane.b32.xlu0 %v300, 120
        %v303 = vpop.permute.xlu0 %302
        %v305 = vsub.f32 %v296, %v303
        %306 = vrot.lane.b32.xlu0 %v272, 40
        %v307 = vpop.permute.xlu0 %306
        %v309 = vmul.f32 %v269, %v307
        %311 = vrot.lane.b32.xlu0 %v283, 8
        %v312 = vpop.permute.xlu0 %311
        %v314 = vadd.f32 %v309, %v312
        %316 = vrot.lane.b32.xlu0 %v292, 112
        %v317 = vpop.permute.xlu0 %316
        %319 = vrot.lane.b32.xlu0 %v314, 88
        %v320 = vpop.permute.xlu0 %319
        %vm321 = vcmask 31744
        %v322 = vsel %vm321, %v317, 0
        %v324 = vsel %vm321, %v320, 0
        %326 = vmatprep.subr.mxu0 0.0
        %327 = vmatpush1.xpose.msra.mxu0 0.0
        %328 = vmatprep.subr.mxu0 0.0
        %329 = vmatpush1.xpose.msra.mxu0 0.0
        %330 = vmatprep.subr.mxu0 0.0
        %331 = vmatpush1.xpose.msra.mxu0 0.0
        %332 = vmatprep.subr.mxu0 0.0
        %333 = vmatpush1.xpose.msra.mxu0 0.0
        %334 = vmatprep.subr.mxu0 0.0
        %335 = vmatpush1.xpose.msra.mxu0 0.0
        %336 = vmatprep.subr.mxu0 0.0
        %337 = vmatpush1.xpose.msra.mxu0 0.0
        %338 = vmatprep.subr.mxu0 0.0
        %339 = vmatpush1.xpose.msra.mxu0 0.0
        %340 = vmatprep.subr.mxu0 0.0
        %341 = vmatpush1.xpose.msra.mxu0 0.0
        %342 = vmatprep.subr.mxu0 0.0
        %343 = vmatpush1.xpose.msra.mxu0 0.0
        %344 = vmatprep.subr.mxu0 0.0
        %345 = vmatpush1.xpose.msra.mxu0 0.0
        %346 = vmatprep.subr.mxu0 0.0
        %347 = vmatpush1.xpose.msra.mxu0 0.0
        %348 = vmatprep.subr.mxu0 0.0
        %349 = vmatpush1.xpose.msra.mxu0 0.0
        %350 = vmatprep.subr.mxu0 0.0
        %351 = vmatpush1.xpose.msra.mxu0 0.0
        %352 = vmatprep.subr.mxu0 0.0
        %353 = vmatpush1.xpose.msra.mxu0 0.0
        %354 = vmatprep.subr.mxu0 0.0
        %355 = vmatpush1.xpose.msra.mxu0 0.0
        %356 = vmatprep.subr.mxu0 0.0
        %357 = vmatpush1.xpose.msra.mxu0 %v324
        %358 = vmatprep.subr.mxu0 0.0
        %359 = vmatpush2.xpose.msra.mxu0 0.0
        %360 = vmatprep.subr.mxu0 0.0
        %361 = vmatpush2.xpose.msra.mxu0 0.0
        %362 = vmatprep.subr.mxu0 0.0
        %363 = vmatpush2.xpose.msra.mxu0 0.0
        %364 = vmatprep.subr.mxu0 0.0
        %365 = vmatpush2.xpose.msra.mxu0 0.0
        %366 = vmatprep.subr.mxu0 0.0
        %367 = vmatpush2.xpose.msra.mxu0 0.0
        %368 = vmatprep.subr.mxu0 0.0
        %369 = vmatpush2.xpose.msra.mxu0 0.0
        %370 = vmatprep.subr.mxu0 0.0
        %371 = vmatpush2.xpose.msra.mxu0 0.0
        %372 = vmatprep.subr.mxu0 0.0
        %373 = vmatpush2.xpose.msra.mxu0 0.0
        %374 = vmatprep.subr.mxu0 0.0
        %375 = vmatpush2.xpose.msra.mxu0 0.0
        %376 = vmatprep.subr.mxu0 0.0
        %377 = vmatpush2.xpose.msra.mxu0 0.0
        %378 = vmatprep.subr.mxu0 0.0
        %379 = vmatpush2.xpose.msra.mxu0 0.0
        %380 = vmatprep.subr.mxu0 0.0
        %381 = vmatpush2.xpose.msra.mxu0 0.0
        %382 = vmatprep.subr.mxu0 0.0
        %383 = vmatpush2.xpose.msra.mxu0 0.0
        %384 = vmatprep.subr.mxu0 0.0
        %385 = vmatpush2.xpose.msra.mxu0 0.0
        %386 = vmatprep.subr.mxu0 0.0
        %387 = vmatpush2.xpose.msra.mxu0 0.0
        %388 = vmatprep.subr.mxu0 0.0
        %389 = vmatpush2.xpose.msra.mxu0 0.0
        %390 = vmatprep.mubr.f32.mxu0 0.0
        %391 = vmatmul.mubr.f32.gmra.mxu0 %v322
        %v392 = vpop.f32.mrf.mxu0
        %v393 = vadd.f32 0.0, %v392
        %v394 = vpop.f32.mrf.mxu0
        %395 = vdwg.mxu0
        %397 = vrot.lane.b32.xlu0 %v305, 96
        %v398 = vpop.permute.xlu0 %397
        %v400 = vsel %vm321, %v278, 0
        %v402 = vsel %vm321, %v398, 0
        %404 = vmatprep.subr.mxu0 0.0
        %405 = vmatpush1.xpose.msra.mxu0 0.0
        %406 = vmatprep.subr.mxu0 0.0
        %407 = vmatpush1.xpose.msra.mxu0 0.0
        %408 = vmatprep.subr.mxu0 0.0
        %409 = vmatpush1.xpose.msra.mxu0 0.0
        %410 = vmatprep.subr.mxu0 0.0
        %411 = vmatpush1.xpose.msra.mxu0 0.0
        %412 = vmatprep.subr.mxu0 0.0
        %413 = vmatpush1.xpose.msra.mxu0 0.0
        %414 = vmatprep.subr.mxu0 0.0
        %415 = vmatpush1.xpose.msra.mxu0 0.0
        %416 = vmatprep.subr.mxu0 0.0
        %417 = vmatpush1.xpose.msra.mxu0 0.0
        %418 = vmatprep.subr.mxu0 0.0
        %419 = vmatpush1.xpose.msra.mxu0 0.0
        %420 = vmatprep.subr.mxu0 0.0
        %421 = vmatpush1.xpose.msra.mxu0 0.0
        %422 = vmatprep.subr.mxu0 0.0
        %423 = vmatpush1.xpose.msra.mxu0 0.0
        %424 = vmatprep.subr.mxu0 0.0
        %425 = vmatpush1.xpose.msra.mxu0 0.0
        %426 = vmatprep.subr.mxu0 0.0
        %427 = vmatpush1.xpose.msra.mxu0 0.0
        %428 = vmatprep.subr.mxu0 0.0
        %429 = vmatpush1.xpose.msra.mxu0 0.0
        %430 = vmatprep.subr.mxu0 0.0
        %431 = vmatpush1.xpose.msra.mxu0 0.0
        %432 = vmatprep.subr.mxu0 0.0
        %433 = vmatpush1.xpose.msra.mxu0 0.0
        %434 = vmatprep.subr.mxu0 0.0
        %435 = vmatpush1.xpose.msra.mxu0 %v402
        %436 = vmatprep.subr.mxu0 0.0
        %437 = vmatpush2.xpose.msra.mxu0 0.0
        %438 = vmatprep.subr.mxu0 0.0
        %439 = vmatpush2.xpose.msra.mxu0 0.0
        %440 = vmatprep.subr.mxu0 0.0
        %441 = vmatpush2.xpose.msra.mxu0 0.0
        %442 = vmatprep.subr.mxu0 0.0
        %443 = vmatpush2.xpose.msra.mxu0 0.0
        %444 = vmatprep.subr.mxu0 0.0
        %445 = vmatpush2.xpose.msra.mxu0 0.0
        %446 = vmatprep.subr.mxu0 0.0
        %447 = vmatpush2.xpose.msra.mxu0 0.0
        %448 = vmatprep.subr.mxu0 0.0
        %449 = vmatpush2.xpose.msra.mxu0 0.0
        %450 = vmatprep.subr.mxu0 0.0
        %451 = vmatpush2.xpose.msra.mxu0 0.0
        %452 = vmatprep.subr.mxu0 0.0
        %453 = vmatpush2.xpose.msra.mxu0 0.0
        %454 = vmatprep.subr.mxu0 0.0
        %455 = vmatpush2.xpose.msra.mxu0 0.0
        %456 = vmatprep.subr.mxu0 0.0
        %457 = vmatpush2.xpose.msra.mxu0 0.0
        %458 = vmatprep.subr.mxu0 0.0
        %459 = vmatpush2.xpose.msra.mxu0 0.0
        %460 = vmatprep.subr.mxu0 0.0
        %461 = vmatpush2.xpose.msra.mxu0 0.0
        %462 = vmatprep.subr.mxu0 0.0
        %463 = vmatpush2.xpose.msra.mxu0 0.0
        %464 = vmatprep.subr.mxu0 0.0
        %465 = vmatpush2.xpose.msra.mxu0 0.0
        %466 = vmatprep.subr.mxu0 0.0
        %467 = vmatpush2.xpose.msra.mxu0 0.0
        %468 = vmatprep.mubr.f32.mxu0 0.0
        %469 = vmatmul.mubr.f32.gmra.mxu0 %v400
        %v470 = vpop.f32.mrf.mxu0
        %v471 = vadd.f32 %v393, %v470
        %v472 = vpop.f32.mrf.mxu0
        %473 = vdwg.mxu0
        %vm474 = vcmask 64512
        %v475 = vsel %vm474, %v471, -inf
        %476 = vmax.xlane.f32.xlu0 %v475
        %v477 = vpop.xlane.xlu0 %476
        %v478 = vsub.f32 %v471, %v477
        %v479 = vmul.f32 %v478, 1.442695
        %v480 = vpow.pop %v479
        %v481 = vsel %vm474, %v480, 0.0
        %482 = vadd.xlane.f32.xlu0 %v481
        %v483 = vpop.xlane.xlu0 %482
        %485 = vrot.lane.b32.xlu0 %v269, 80
        %v486 = vpop.permute.xlu0 %485
        %v489 = vsel %vm474, %v480, 0
        %491 = vmatprep.subr.mxu0 0.0
        %492 = vmatpush1.msra.mxu0 0.0
        %493 = vmatprep.subr.mxu0 0.0
        %494 = vmatpush1.msra.mxu0 0.0
        %495 = vmatprep.subr.mxu0 0.0
        %496 = vmatpush1.msra.mxu0 0.0
        %497 = vmatprep.subr.mxu0 0.0
        %498 = vmatpush1.msra.mxu0 0.0
        %499 = vmatprep.subr.mxu0 0.0
        %500 = vmatpush1.msra.mxu0 0.0
        %501 = vmatprep.subr.mxu0 0.0
        %502 = vmatpush1.msra.mxu0 0.0
        %503 = vmatprep.subr.mxu0 0.0
        %504 = vmatpush1.msra.mxu0 0.0
        %505 = vmatprep.subr.mxu0 0.0
        %506 = vmatpush1.msra.mxu0 0.0
        %507 = vmatprep.subr.mxu0 0.0
        %508 = vmatpush1.msra.mxu0 0.0
        %509 = vmatprep.subr.mxu0 0.0
        %510 = vmatpush1.msra.mxu0 0.0
        %511 = vmatprep.subr.mxu0 0.0
        %512 = vmatpush1.msra.mxu0 0.0
        %513 = vmatprep.subr.mxu0 0.0
        %514 = vmatpush1.msra.mxu0 0.0
        %515 = vmatprep.subr.mxu0 0.0
        %516 = vmatpush1.msra.mxu0 0.0
        %517 = vmatprep.subr.mxu0 0.0
        %518 = vmatpush1.msra.mxu0 0.0
        %519 = vmatprep.subr.mxu0 0.0
        %520 = vmatpush1.msra.mxu0 0.0
        %521 = vmatprep.subr.mxu0 0.0
        %522 = vmatpush1.msra.mxu0 %v486
        %523 = vmatprep.subr.mxu0 0.0
        %524 = vmatpush2.msra.mxu0 0.0
        %525 = vmatprep.subr.mxu0 0.0
        %526 = vmatpush2.msra.mxu0 0.0
        %527 = vmatprep.subr.mxu0 0.0
        %528 = vmatpush2.msra.mxu0 0.0
        %529 = vmatprep.subr.mxu0 0.0
        %530 = vmatpush2.msra.mxu0 0.0
        %531 = vmatprep.subr.mxu0 0.0
        %532 = vmatpush2.msra.mxu0 0.0
        %533 = vmatprep.subr.mxu0 0.0
        %534 = vmatpush2.msra.mxu0 0.0
        %535 = vmatprep.subr.mxu0 0.0
        %536 = vmatpush2.msra.mxu0 0.0
        %537 = vmatprep.subr.mxu0 0.0
        %538 = vmatpush2.msra.mxu0 0.0
        %539 = vmatprep.subr.mxu0 0.0
        %540 = vmatpush2.msra.mxu0 0.0
        %541 = vmatprep.subr.mxu0 0.0
        %542 = vmatpush2.msra.mxu0 0.0
        %543 = vmatprep.subr.mxu0 0.0
        %544 = vmatpush2.msra.mxu0 0.0
        %545 = vmatprep.subr.mxu0 0.0
        %546 = vmatpush2.msra.mxu0 0.0
        %547 = vmatprep.subr.mxu0 0.0
        %548 = vmatpush2.msra.mxu0 0.0
        %549 = vmatprep.subr.mxu0 0.0
        %550 = vmatpush2.msra.mxu0 0.0
        %551 = vmatprep.subr.mxu0 0.0
        %552 = vmatpush2.msra.mxu0 0.0
        %553 = vmatprep.subr.mxu0 0.0
        %554 = vmatpush2.msra.mxu0 0.0
        %555 = vmatprep.mubr.f32.mxu0 0.0
        %556 = vmatmul.mubr.f32.gmra.mxu0 %v489
        %v557 = vpop.f32.mrf.mxu0
        %v558 = vadd.f32 0.0, %v557
        %v559 = vpop.f32.mrf.mxu0
        %560 = vdwg.mxu0
        %v561 = vrcp.pop %v483
        %v562 = vmul.f32 %v558, %v561
        %563 = vrot.lane.b32.xlu0 %v292, 108
        %v564 = vpop.permute.xlu0 %563
        %v565 = vsel %vm321, %v564, 0
        %567 = vmatprep.subr.mxu0 0.0
        %568 = vmatpush1.xpose.msra.mxu0 0.0
        %569 = vmatprep.subr.mxu0 0.0
        %570 = vmatpush1.xpose.msra.mxu0 0.0
        %571 = vmatprep.subr.mxu0 0.0
        %572 = vmatpush1.xpose.msra.mxu0 0.0
        %573 = vmatprep.subr.mxu0 0.0
        %574 = vmatpush1.xpose.msra.mxu0 0.0
        %575 = vmatprep.subr.mxu0 0.0
        %576 = vmatpush1.xpose.msra.mxu0 0.0
        %577 = vmatprep.subr.mxu0 0.0
        %578 = vmatpush1.xpose.msra.mxu0 0.0
        %579 = vmatprep.subr.mxu0 0.0
        %580 = vmatpush1.xpose.msra.mxu0 0.0
        %581 = vmatprep.subr.mxu0 0.0
        %582 = vmatpush1.xpose.msra.mxu0 0.0
        %583 = vmatprep.subr.mxu0 0.0
        %584 = vmatpush1.xpose.msra.mxu0 0.0
        %585 = vmatprep.subr.mxu0 0.0
        %586 = vmatpush1.xpose.msra.mxu0 0.0
        %587 = vmatprep.subr.mxu0 0.0
        %588 = vmatpush1.xpose.msra.mxu0 0.0
        %589 = vmatprep.subr.mxu0 0.0
        %590 = vmatpush1.xpose.msra.mxu0 0.0
        %591 = vmatprep.subr.mxu0 0.0
        %592 = vmatpush1.xpose.msra.mxu0 0.0
        %593 = vmatprep.subr.mxu0 0.0
        %594 = vmatpush1.xpose.msra.mxu0 0.0
        %595 = vmatprep.subr.mxu0 0.0
        %596 = vmatpush1.xpose.msra.mxu0 0.0
        %597 = vmatprep.subr.mxu0 0.0
        %598 = vmatpush1.xpose.msra.mxu0 %v324
        %599 = vmatprep.subr.mxu0 0.0
        %600 = vmatpush2.xpose.msra.mxu0 0.0
        %601 = vmatprep.subr.mxu0 0.0
        %602 = vmatpush2.xpose.msra.mxu0 0.0
        %603 = vmatprep.subr.mxu0 0.0
        %604 = vmatpush2.xpose.msra.mxu0 0.0
        %605 = vmatprep.subr.mxu0 0.0
        %606 = vmatpush2.xpose.msra.mxu0 0.0
        %607 = vmatprep.subr.mxu0 0.0
        %608 = vmatpush2.xpose.msra.mxu0 0.0
        %609 = vmatprep.subr.mxu0 0.0
        %610 = vmatpush2.xpose.msra.mxu0 0.0
        %611 = vmatprep.subr.mxu0 0.0
        %612 = vmatpush2.xpose.msra.mxu0 0.0
        %613 = vmatprep.subr.mxu0 0.0
        %614 = vmatpush2.xpose.msra.mxu0 0.0
        %615 = vmatprep.subr.mxu0 0.0
        %616 = vmatpush2.xpose.msra.mxu0 0.0
        %617 = vmatprep.subr.mxu0 0.0
        %618 = vmatpush2.xpose.msra.mxu0 0.0
        %619 = vmatprep.subr.mxu0 0.0
        %620 = vmatpush2.xpose.msra.mxu0 0.0
        %621 = vmatprep.subr.mxu0 0.0
        %622 = vmatpush2.xpose.msra.mxu0 0.0
        %623 = vmatprep.subr.mxu0 0.0
        %624 = vmatpush2.xpose.msra.mxu0 0.0
        %625 = vmatprep.subr.mxu0 0.0
        %626 = vmatpush2.xpose.msra.mxu0 0.0
        %627 = vmatprep.subr.mxu0 0.0
        %628 = vmatpush2.xpose.msra.mxu0 0.0
        %629 = vmatprep.subr.mxu0 0.0
        %630 = vmatpush2.xpose.msra.mxu0 0.0
        %631 = vmatprep.mubr.f32.mxu0 0.0
        %632 = vmatmul.mubr.f32.gmra.mxu0 %v565
        %v633 = vpop.f32.mrf.mxu0
        %v634 = vadd.f32 0.0, %v633
        %v635 = vpop.f32.mrf.mxu0
        %636 = vdwg.mxu0
        %637 = vrot.lane.b32.xlu0 %v278, 124
        %v638 = vpop.permute.xlu0 %637
        %v639 = vsel %vm321, %v638, 0
        %641 = vmatprep.subr.mxu0 0.0
        %642 = vmatpush1.xpose.msra.mxu0 0.0
        %643 = vmatprep.subr.mxu0 0.0
        %644 = vmatpush1.xpose.msra.mxu0 0.0
        %645 = vmatprep.subr.mxu0 0.0
        %646 = vmatpush1.xpose.msra.mxu0 0.0
        %647 = vmatprep.subr.mxu0 0.0
        %648 = vmatpush1.xpose.msra.mxu0 0.0
        %649 = vmatprep.subr.mxu0 0.0
        %650 = vmatpush1.xpose.msra.mxu0 0.0
        %651 = vmatprep.subr.mxu0 0.0
        %652 = vmatpush1.xpose.msra.mxu0 0.0
        %653 = vmatprep.subr.mxu0 0.0
        %654 = vmatpush1.xpose.msra.mxu0 0.0
        %655 = vmatprep.subr.mxu0 0.0
        %656 = vmatpush1.xpose.msra.mxu0 0.0
        %657 = vmatprep.subr.mxu0 0.0
        %658 = vmatpush1.xpose.msra.mxu0 0.0
        %659 = vmatprep.subr.mxu0 0.0
        %660 = vmatpush1.xpose.msra.mxu0 0.0
        %661 = vmatprep.subr.mxu0 0.0
        %662 = vmatpush1.xpose.msra.mxu0 0.0
        %663 = vmatprep.subr.mxu0 0.0
        %664 = vmatpush1.xpose.msra.mxu0 0.0
        %665 = vmatprep.subr.mxu0 0.0
        %666 = vmatpush1.xpose.msra.mxu0 0.0
        %667 = vmatprep.subr.mxu0 0.0
        %668 = vmatpush1.xpose.msra.mxu0 0.0
        %669 = vmatprep.subr.mxu0 0.0
        %670 = vmatpush1.xpose.msra.mxu0 0.0
        %671 = vmatprep.subr.mxu0 0.0
        %672 = vmatpush1.xpose.msra.mxu0 %v402
        %673 = vmatprep.subr.mxu0 0.0
        %674 = vmatpush2.xpose.msra.mxu0 0.0
        %675 = vmatprep.subr.mxu0 0.0
        %676 = vmatpush2.xpose.msra.mxu0 0.0
        %677 = vmatprep.subr.mxu0 0.0
        %678 = vmatpush2.xpose.msra.mxu0 0.0
        %679 = vmatprep.subr.mxu0 0.0
        %680 = vmatpush2.xpose.msra.mxu0 0.0
        %681 = vmatprep.subr.mxu0 0.0
        %682 = vmatpush2.xpose.msra.mxu0 0.0
        %683 = vmatprep.subr.mxu0 0.0
        %684 = vmatpush2.xpose.msra.mxu0 0.0
        %685 = vmatprep.subr.mxu0 0.0
        %686 = vmatpush2.xpose.msra.mxu0 0.0
        %687 = vmatprep.subr.mxu0 0.0
        %688 = vmatpush2.xpose.msra.mxu0 0.0
        %689 = vmatprep.subr.mxu0 0.0
        %690 = vmatpush2.xpose.msra.mxu0 0.0
        %691 = vmatprep.subr.mxu0 0.0
        %692 = vmatpush2.xpose.msra.mxu0 0.0
        %693 = vmatprep.subr.mxu0 0.0
        %694 = vmatpush2.xpose.msra.mxu0 0.0
        %695 = vmatprep.subr.mxu0 0.0
        %696 = vmatpush2.xpose.msra.mxu0 0.0
        %697 = vmatprep.subr.mxu0 0.0
        %698 = vmatpush2.xpose.msra.mxu0 0.0
        %699 = vmatprep.subr.mxu0 0.0
        %700 = vmatpush2.xpose.msra.mxu0 0.0
        %701 = vmatprep.subr.mxu0 0.0
        %702 = vmatpush2.xpose.msra.mxu0 0.0
        %703 = vmatprep.subr.mxu0 0.0
        %704 = vmatpush2.xpose.msra.mxu0 0.0
        %705 = vmatprep.mubr.f32.mxu0 0.0
        %706 = vmatmul.mubr.f32.gmra.mxu0 %v639
        %v707 = vpop.f32.mrf.mxu0
        %v708 = vadd.f32 %v634, %v707
        %v709 = vpop.f32.mrf.mxu0
        %710 = vdwg.mxu0
        %v711 = vsel %vm474, %v708, -inf
        %712 = vmax.xlane.f32.xlu0 %v711
        %v713 = vpop.xlane.xlu0 %712
        %v714 = vsub.f32 %v708, %v713
        %v715 = vmul.f32 %v714, 1.442695
        %v716 = vpow.pop %v715
        %v717 = vsel %vm474, %v716, 0.0
        %718 = vadd.xlane.f32.xlu0 %v717
        %v719 = vpop.xlane.xlu0 %718
        %v721 = vsel %vm474, %v716, 0
        %723 = vmatprep.subr.mxu0 0.0
        %724 = vmatpush1.msra.mxu0 0.0
        %725 = vmatprep.subr.mxu0 0.0
        %726 = vmatpush1.msra.mxu0 0.0
        %727 = vmatprep.subr.mxu0 0.0
        %728 = vmatpush1.msra.mxu0 0.0
        %729 = vmatprep.subr.mxu0 0.0
        %730 = vmatpush1.msra.mxu0 0.0
        %731 = vmatprep.subr.mxu0 0.0
        %732 = vmatpush1.msra.mxu0 0.0
        %733 = vmatprep.subr.mxu0 0.0
        %734 = vmatpush1.msra.mxu0 0.0
        %735 = vmatprep.subr.mxu0 0.0
        %736 = vmatpush1.msra.mxu0 0.0
        %737 = vmatprep.subr.mxu0 0.0
        %738 = vmatpush1.msra.mxu0 0.0
        %739 = vmatprep.subr.mxu0 0.0
        %740 = vmatpush1.msra.mxu0 0.0
        %741 = vmatprep.subr.mxu0 0.0
        %742 = vmatpush1.msra.mxu0 0.0
        %743 = vmatprep.subr.mxu0 0.0
        %744 = vmatpush1.msra.mxu0 0.0
        %745 = vmatprep.subr.mxu0 0.0
        %746 = vmatpush1.msra.mxu0 0.0
        %747 = vmatprep.subr.mxu0 0.0
        %748 = vmatpush1.msra.mxu0 0.0
        %749 = vmatprep.subr.mxu0 0.0
        %750 = vmatpush1.msra.mxu0 0.0
        %751 = vmatprep.subr.mxu0 0.0
        %752 = vmatpush1.msra.mxu0 0.0
        %753 = vmatprep.subr.mxu0 0.0
        %754 = vmatpush1.msra.mxu0 %v486
        %755 = vmatprep.subr.mxu0 0.0
        %756 = vmatpush2.msra.mxu0 0.0
        %757 = vmatprep.subr.mxu0 0.0
        %758 = vmatpush2.msra.mxu0 0.0
        %759 = vmatprep.subr.mxu0 0.0
        %760 = vmatpush2.msra.mxu0 0.0
        %761 = vmatprep.subr.mxu0 0.0
        %762 = vmatpush2.msra.mxu0 0.0
        %763 = vmatprep.subr.mxu0 0.0
        %764 = vmatpush2.msra.mxu0 0.0
        %765 = vmatprep.subr.mxu0 0.0
        %766 = vmatpush2.msra.mxu0 0.0
        %767 = vmatprep.subr.mxu0 0.0
        %768 = vmatpush2.msra.mxu0 0.0
        %769 = vmatprep.subr.mxu0 0.0
        %770 = vmatpush2.msra.mxu0 0.0
        %771 = vmatprep.subr.mxu0 0.0
        %772 = vmatpush2.msra.mxu0 0.0
        %773 = vmatprep.subr.mxu0 0.0
        %774 = vmatpush2.msra.mxu0 0.0
        %775 = vmatprep.subr.mxu0 0.0
        %776 = vmatpush2.msra.mxu0 0.0
        %777 = vmatprep.subr.mxu0 0.0
        %778 = vmatpush2.msra.mxu0 0.0
        %779 = vmatprep.subr.mxu0 0.0
        %780 = vmatpush2.msra.mxu0 0.0
        %781 = vmatprep.subr.mxu0 0.0
        %782 = vmatpush2.msra.mxu0 0.0
        %783 = vmatprep.subr.mxu0 0.0
        %784 = vmatpush2.msra.mxu0 0.0
        %785 = vmatprep.subr.mxu0 0.0
        %786 = vmatpush2.msra.mxu0 0.0
        %787 = vmatprep.mubr.f32.mxu0 0.0
        %788 = vmatmul.mubr.f32.gmra.mxu0 %v721
        %v789 = vpop.f32.mrf.mxu0
        %v790 = vadd.f32 0.0, %v789
        %v791 = vpop.f32.mrf.mxu0
        %792 = vdwg.mxu0
        %v793 = vrcp.pop %v719
        %v794 = vmul.f32 %v790, %v793
        %795 = vrot.lane.b32.xlu0 %v292, 104
        %v796 = vpop.permute.xlu0 %795
        %797 = vrot.lane.b32.xlu0 %v314, 84
        %v798 = vpop.permute.xlu0 %797
        %v799 = vsel %vm321, %v796, 0
        %v801 = vsel %vm321, %v798, 0
        %803 = vmatprep.subr.mxu0 0.0
        %804 = vmatpush1.xpose.msra.mxu0 0.0
        %805 = vmatprep.subr.mxu0 0.0
        %806 = vmatpush1.xpose.msra.mxu0 0.0
        %807 = vmatprep.subr.mxu0 0.0
        %808 = vmatpush1.xpose.msra.mxu0 0.0
        %809 = vmatprep.subr.mxu0 0.0
        %810 = vmatpush1.xpose.msra.mxu0 0.0
        %811 = vmatprep.subr.mxu0 0.0
        %812 = vmatpush1.xpose.msra.mxu0 0.0
        %813 = vmatprep.subr.mxu0 0.0
        %814 = vmatpush1.xpose.msra.mxu0 0.0
        %815 = vmatprep.subr.mxu0 0.0
        %816 = vmatpush1.xpose.msra.mxu0 0.0
        %817 = vmatprep.subr.mxu0 0.0
        %818 = vmatpush1.xpose.msra.mxu0 0.0
        %819 = vmatprep.subr.mxu0 0.0
        %820 = vmatpush1.xpose.msra.mxu0 0.0
        %821 = vmatprep.subr.mxu0 0.0
        %822 = vmatpush1.xpose.msra.mxu0 0.0
        %823 = vmatprep.subr.mxu0 0.0
        %824 = vmatpush1.xpose.msra.mxu0 0.0
        %825 = vmatprep.subr.mxu0 0.0
        %826 = vmatpush1.xpose.msra.mxu0 0.0
        %827 = vmatprep.subr.mxu0 0.0
        %828 = vmatpush1.xpose.msra.mxu0 0.0
        %829 = vmatprep.subr.mxu0 0.0
        %830 = vmatpush1.xpose.msra.mxu0 0.0
        %831 = vmatprep.subr.mxu0 0.0
        %832 = vmatpush1.xpose.msra.mxu0 0.0
        %833 = vmatprep.subr.mxu0 0.0
        %834 = vmatpush1.xpose.msra.mxu0 %v801
        %835 = vmatprep.subr.mxu0 0.0
        %836 = vmatpush2.xpose.msra.mxu0 0.0
        %837 = vmatprep.subr.mxu0 0.0
        %838 = vmatpush2.xpose.msra.mxu0 0.0
        %839 = vmatprep.subr.mxu0 0.0
        %840 = vmatpush2.xpose.msra.mxu0 0.0
        %841 = vmatprep.subr.mxu0 0.0
        %842 = vmatpush2.xpose.msra.mxu0 0.0
        %843 = vmatprep.subr.mxu0 0.0
        %844 = vmatpush2.xpose.msra.mxu0 0.0
        %845 = vmatprep.subr.mxu0 0.0
        %846 = vmatpush2.xpose.msra.mxu0 0.0
        %847 = vmatprep.subr.mxu0 0.0
        %848 = vmatpush2.xpose.msra.mxu0 0.0
        %849 = vmatprep.subr.mxu0 0.0
        %850 = vmatpush2.xpose.msra.mxu0 0.0
        %851 = vmatprep.subr.mxu0 0.0
        %852 = vmatpush2.xpose.msra.mxu0 0.0
        %853 = vmatprep.subr.mxu0 0.0
        %854 = vmatpush2.xpose.msra.mxu0 0.0
        %855 = vmatprep.subr.mxu0 0.0
        %856 = vmatpush2.xpose.msra.mxu0 0.0
        %857 = vmatprep.subr.mxu0 0.0
        %858 = vmatpush2.xpose.msra.mxu0 0.0
        %859 = vmatprep.subr.mxu0 0.0
        %860 = vmatpush2.xpose.msra.mxu0 0.0
        %861 = vmatprep.subr.mxu0 0.0
        %862 = vmatpush2.xpose.msra.mxu0 0.0
        %863 = vmatprep.subr.mxu0 0.0
        %864 = vmatpush2.xpose.msra.mxu0 0.0
        %865 = vmatprep.subr.mxu0 0.0
        %866 = vmatpush2.xpose.msra.mxu0 0.0
        %867 = vmatprep.mubr.f32.mxu0 0.0
        %868 = vmatmul.mubr.f32.gmra.mxu0 %v799
        %v869 = vpop.f32.mrf.mxu0
        %v870 = vadd.f32 0.0, %v869
        %v871 = vpop.f32.mrf.mxu0
        %872 = vdwg.mxu0
        %873 = vrot.lane.b32.xlu0 %v278, 120
        %v874 = vpop.permute.xlu0 %873
        %875 = vrot.lane.b32.xlu0 %v305, 92
        %v876 = vpop.permute.xlu0 %875
        %v877 = vsel %vm321, %v874, 0
        %v879 = vsel %vm321, %v876, 0
        %881 = vmatprep.subr.mxu0 0.0
        %882 = vmatpush1.xpose.msra.mxu0 0.0
        %883 = vmatprep.subr.mxu0 0.0
        %884 = vmatpush1.xpose.msra.mxu0 0.0
        %885 = vmatprep.subr.mxu0 0.0
        %886 = vmatpush1.xpose.msra.mxu0 0.0
        %887 = vmatprep.subr.mxu0 0.0
        %888 = vmatpush1.xpose.msra.mxu0 0.0
        %889 = vmatprep.subr.mxu0 0.0
        %890 = vmatpush1.xpose.msra.mxu0 0.0
        %891 = vmatprep.subr.mxu0 0.0
        %892 = vmatpush1.xpose.msra.mxu0 0.0
        %893 = vmatprep.subr.mxu0 0.0
        %894 = vmatpush1.xpose.msra.mxu0 0.0
        %895 = vmatprep.subr.mxu0 0.0
        %896 = vmatpush1.xpose.msra.mxu0 0.0
        %897 = vmatprep.subr.mxu0 0.0
        %898 = vmatpush1.xpose.msra.mxu0 0.0
        %899 = vmatprep.subr.mxu0 0.0
        %900 = vmatpush1.xpose.msra.mxu0 0.0
        %901 = vmatprep.subr.mxu0 0.0
        %902 = vmatpush1.xpose.msra.mxu0 0.0
        %903 = vmatprep.subr.mxu0 0.0
        %904 = vmatpush1.xpose.msra.mxu0 0.0
        %905 = vmatprep.subr.mxu0 0.0
        %906 = vmatpush1.xpose.msra.mxu0 0.0
        %907 = vmatprep.subr.mxu0 0.0
        %908 = vmatpush1.xpose.msra.mxu0 0.0
        %909 = vmatprep.subr.mxu0 0.0
        %910 = vmatpush1.xpose.msra.mxu0 0.0
        %911 = vmatprep.subr.mxu0 0.0
        %912 = vmatpush1.xpose.msra.mxu0 %v879
        %913 = vmatprep.subr.mxu0 0.0
        %914 = vmatpush2.xpose.msra.mxu0 0.0
        %915 = vmatprep.subr.mxu0 0.0
        %916 = vmatpush2.xpose.msra.mxu0 0.0
        %917 = vmatprep.subr.mxu0 0.0
        %918 = vmatpush2.xpose.msra.mxu0 0.0
        %919 = vmatprep.subr.mxu0 0.0
        %920 = vmatpush2.xpose.msra.mxu0 0.0
        %921 = vmatprep.subr.mxu0 0.0
        %922 = vmatpush2.xpose.msra.mxu0 0.0
        %923 = vmatprep.subr.mxu0 0.0
        %924 = vmatpush2.xpose.msra.mxu0 0.0
        %925 = vmatprep.subr.mxu0 0.0
        %926 = vmatpush2.xpose.msra.mxu0 0.0
        %927 = vmatprep.subr.mxu0 0.0
        %928 = vmatpush2.xpose.msra.mxu0 0.0
        %929 = vmatprep.subr.mxu0 0.0
        %930 = vmatpush2.xpose.msra.mxu0 0.0
        %931 = vmatprep.subr.mxu0 0.0
        %932 = vmatpush2.xpose.msra.mxu0 0.0
        %933 = vmatprep.subr.mxu0 0.0
        %934 = vmatpush2.xpose.msra.mxu0 0.0
        %935 = vmatprep.subr.mxu0 0.0
        %936 = vmatpush2.xpose.msra.mxu0 0.0
        %937 = vmatprep.subr.mxu0 0.0
        %938 = vmatpush2.xpose.msra.mxu0 0.0
        %939 = vmatprep.subr.mxu0 0.0
        %940 = vmatpush2.xpose.msra.mxu0 0.0
        %941 = vmatprep.subr.mxu0 0.0
        %942 = vmatpush2.xpose.msra.mxu0 0.0
        %943 = vmatprep.subr.mxu0 0.0
        %944 = vmatpush2.xpose.msra.mxu0 0.0
        %945 = vmatprep.mubr.f32.mxu0 0.0
        %946 = vmatmul.mubr.f32.gmra.mxu0 %v877
        %v947 = vpop.f32.mrf.mxu0
        %v948 = vadd.f32 %v870, %v947
        %v949 = vpop.f32.mrf.mxu0
        %950 = vdwg.mxu0
        %v951 = vsel %vm474, %v948, -inf
        %952 = vmax.xlane.f32.xlu0 %v951
        %v953 = vpop.xlane.xlu0 %952
        %v954 = vsub.f32 %v948, %v953
        %v955 = vmul.f32 %v954, 1.442695
        %v956 = vpow.pop %v955
        %v957 = vsel %vm474, %v956, 0.0
        %958 = vadd.xlane.f32.xlu0 %v957
        %v959 = vpop.xlane.xlu0 %958
        %960 = vrot.lane.b32.xlu0 %v269, 72
        %v961 = vpop.permute.xlu0 %960
        %v964 = vsel %vm474, %v956, 0
        %966 = vmatprep.subr.mxu0 0.0
        %967 = vmatpush1.msra.mxu0 0.0
        %968 = vmatprep.subr.mxu0 0.0
        %969 = vmatpush1.msra.mxu0 0.0
        %970 = vmatprep.subr.mxu0 0.0
        %971 = vmatpush1.msra.mxu0 0.0
        %972 = vmatprep.subr.mxu0 0.0
        %973 = vmatpush1.msra.mxu0 0.0
        %974 = vmatprep.subr.mxu0 0.0
        %975 = vmatpush1.msra.mxu0 0.0
        %976 = vmatprep.subr.mxu0 0.0
        %977 = vmatpush1.msra.mxu0 0.0
        %978 = vmatprep.subr.mxu0 0.0
        %979 = vmatpush1.msra.mxu0 0.0
        %980 = vmatprep.subr.mxu0 0.0
        %981 = vmatpush1.msra.mxu0 0.0
        %982 = vmatprep.subr.mxu0 0.0
        %983 = vmatpush1.msra.mxu0 0.0
        %984 = vmatprep.subr.mxu0 0.0
        %985 = vmatpush1.msra.mxu0 0.0
        %986 = vmatprep.subr.mxu0 0.0
        %987 = vmatpush1.msra.mxu0 0.0
        %988 = vmatprep.subr.mxu0 0.0
        %989 = vmatpush1.msra.mxu0 0.0
        %990 = vmatprep.subr.mxu0 0.0
        %991 = vmatpush1.msra.mxu0 0.0
        %992 = vmatprep.subr.mxu0 0.0
        %993 = vmatpush1.msra.mxu0 0.0
        %994 = vmatprep.subr.mxu0 0.0
        %995 = vmatpush1.msra.mxu0 0.0
        %996 = vmatprep.subr.mxu0 0.0
        %997 = vmatpush1.msra.mxu0 %v961
        %998 = vmatprep.subr.mxu0 0.0
        %999 = vmatpush2.msra.mxu0 0.0
        %1000 = vmatprep.subr.mxu0 0.0
        %1001 = vmatpush2.msra.mxu0 0.0
        %1002 = vmatprep.subr.mxu0 0.0
        %1003 = vmatpush2.msra.mxu0 0.0
        %1004 = vmatprep.subr.mxu0 0.0
        %1005 = vmatpush2.msra.mxu0 0.0
        %1006 = vmatprep.subr.mxu0 0.0
        %1007 = vmatpush2.msra.mxu0 0.0
        %1008 = vmatprep.subr.mxu0 0.0
        %1009 = vmatpush2.msra.mxu0 0.0
        %1010 = vmatprep.subr.mxu0 0.0
        %1011 = vmatpush2.msra.mxu0 0.0
        %1012 = vmatprep.subr.mxu0 0.0
        %1013 = vmatpush2.msra.mxu0 0.0
        %1014 = vmatprep.subr.mxu0 0.0
        %1015 = vmatpush2.msra.mxu0 0.0
        %1016 = vmatprep.subr.mxu0 0.0
        %1017 = vmatpush2.msra.mxu0 0.0
        %1018 = vmatprep.subr.mxu0 0.0
        %1019 = vmatpush2.msra.mxu0 0.0
        %1020 = vmatprep.subr.mxu0 0.0
        %1021 = vmatpush2.msra.mxu0 0.0
        %1022 = vmatprep.subr.mxu0 0.0
        %1023 = vmatpush2.msra.mxu0 0.0
        %1024 = vmatprep.subr.mxu0 0.0
        %1025 = vmatpush2.msra.mxu0 0.0
        %1026 = vmatprep.subr.mxu0 0.0
        %1027 = vmatpush2.msra.mxu0 0.0
        %1028 = vmatprep.subr.mxu0 0.0
        %1029 = vmatpush2.msra.mxu0 0.0
        %1030 = vmatprep.mubr.f32.mxu0 0.0
        %1031 = vmatmul.mubr.f32.gmra.mxu0 %v964
        %v1032 = vpop.f32.mrf.mxu0
        %v1033 = vadd.f32 0.0, %v1032
        %v1034 = vpop.f32.mrf.mxu0
        %1035 = vdwg.mxu0
        %v1036 = vrcp.pop %v959
        %v1037 = vmul.f32 %v1033, %v1036
        %1038 = vrot.lane.b32.xlu0 %v292, 100
        %v1039 = vpop.permute.xlu0 %1038
        %v1040 = vsel %vm321, %v1039, 0
        %1042 = vmatprep.subr.mxu0 0.0
        %1043 = vmatpush1.xpose.msra.mxu0 0.0
        %1044 = vmatprep.subr.mxu0 0.0
        %1045 = vmatpush1.xpose.msra.mxu0 0.0
        %1046 = vmatprep.subr.mxu0 0.0
        %1047 = vmatpush1.xpose.msra.mxu0 0.0
        %1048 = vmatprep.subr.mxu0 0.0
        %1049 = vmatpush1.xpose.msra.mxu0 0.0
        %1050 = vmatprep.subr.mxu0 0.0
        %1051 = vmatpush1.xpose.msra.mxu0 0.0
        %1052 = vmatprep.subr.mxu0 0.0
        %1053 = vmatpush1.xpose.msra.mxu0 0.0
        %1054 = vmatprep.subr.mxu0 0.0
        %1055 = vmatpush1.xpose.msra.mxu0 0.0
        %1056 = vmatprep.subr.mxu0 0.0
        %1057 = vmatpush1.xpose.msra.mxu0 0.0
        %1058 = vmatprep.subr.mxu0 0.0
        %1059 = vmatpush1.xpose.msra.mxu0 0.0
        %1060 = vmatprep.subr.mxu0 0.0
        %1061 = vmatpush1.xpose.msra.mxu0 0.0
        %1062 = vmatprep.subr.mxu0 0.0
        %1063 = vmatpush1.xpose.msra.mxu0 0.0
        %1064 = vmatprep.subr.mxu0 0.0
        %1065 = vmatpush1.xpose.msra.mxu0 0.0
        %1066 = vmatprep.subr.mxu0 0.0
        %1067 = vmatpush1.xpose.msra.mxu0 0.0
        %1068 = vmatprep.subr.mxu0 0.0
        %1069 = vmatpush1.xpose.msra.mxu0 0.0
        %1070 = vmatprep.subr.mxu0 0.0
        %1071 = vmatpush1.xpose.msra.mxu0 0.0
        %1072 = vmatprep.subr.mxu0 0.0
        %1073 = vmatpush1.xpose.msra.mxu0 %v801
        %1074 = vmatprep.subr.mxu0 0.0
        %1075 = vmatpush2.xpose.msra.mxu0 0.0
        %1076 = vmatprep.subr.mxu0 0.0
        %1077 = vmatpush2.xpose.msra.mxu0 0.0
        %1078 = vmatprep.subr.mxu0 0.0
        %1079 = vmatpush2.xpose.msra.mxu0 0.0
        %1080 = vmatprep.subr.mxu0 0.0
        %1081 = vmatpush2.xpose.msra.mxu0 0.0
        %1082 = vmatprep.subr.mxu0 0.0
        %1083 = vmatpush2.xpose.msra.mxu0 0.0
        %1084 = vmatprep.subr.mxu0 0.0
        %1085 = vmatpush2.xpose.msra.mxu0 0.0
        %1086 = vmatprep.subr.mxu0 0.0
        %1087 = vmatpush2.xpose.msra.mxu0 0.0
        %1088 = vmatprep.subr.mxu0 0.0
        %1089 = vmatpush2.xpose.msra.mxu0 0.0
        %1090 = vmatprep.subr.mxu0 0.0
        %1091 = vmatpush2.xpose.msra.mxu0 0.0
        %1092 = vmatprep.subr.mxu0 0.0
        %1093 = vmatpush2.xpose.msra.mxu0 0.0
        %1094 = vmatprep.subr.mxu0 0.0
        %1095 = vmatpush2.xpose.msra.mxu0 0.0
        %1096 = vmatprep.subr.mxu0 0.0
        %1097 = vmatpush2.xpose.msra.mxu0 0.0
        %1098 = vmatprep.subr.mxu0 0.0
        %1099 = vmatpush2.xpose.msra.mxu0 0.0
        %1100 = vmatprep.subr.mxu0 0.0
        %1101 = vmatpush2.xpose.msra.mxu0 0.0
        %1102 = vmatprep.subr.mxu0 0.0
        %1103 = vmatpush2.xpose.msra.mxu0 0.0
        %1104 = vmatprep.subr.mxu0 0.0
        %1105 = vmatpush2.xpose.msra.mxu0 0.0
        %1106 = vmatprep.mubr.f32.mxu0 0.0
        %1107 = vmatmul.mubr.f32.gmra.mxu0 %v1040
        %v1108 = vpop.f32.mrf.mxu0
        %v1109 = vadd.f32 0.0, %v1108
        %v1110 = vpop.f32.mrf.mxu0
        %1111 = vdwg.mxu0
        %1112 = vrot.lane.b32.xlu0 %v278, 116
        %v1113 = vpop.permute.xlu0 %1112
        %v1114 = vsel %vm321, %v1113, 0
        %1116 = vmatprep.subr.mxu0 0.0
        %1117 = vmatpush1.xpose.msra.mxu0 0.0
        %1118 = vmatprep.subr.mxu0 0.0
        %1119 = vmatpush1.xpose.msra.mxu0 0.0
        %1120 = vmatprep.subr.mxu0 0.0
        %1121 = vmatpush1.xpose.msra.mxu0 0.0
        %1122 = vmatprep.subr.mxu0 0.0
        %1123 = vmatpush1.xpose.msra.mxu0 0.0
        %1124 = vmatprep.subr.mxu0 0.0
        %1125 = vmatpush1.xpose.msra.mxu0 0.0
        %1126 = vmatprep.subr.mxu0 0.0
        %1127 = vmatpush1.xpose.msra.mxu0 0.0
        %1128 = vmatprep.subr.mxu0 0.0
        %1129 = vmatpush1.xpose.msra.mxu0 0.0
        %1130 = vmatprep.subr.mxu0 0.0
        %1131 = vmatpush1.xpose.msra.mxu0 0.0
        %1132 = vmatprep.subr.mxu0 0.0
        %1133 = vmatpush1.xpose.msra.mxu0 0.0
        %1134 = vmatprep.subr.mxu0 0.0
        %1135 = vmatpush1.xpose.msra.mxu0 0.0
        %1136 = vmatprep.subr.mxu0 0.0
        %1137 = vmatpush1.xpose.msra.mxu0 0.0
        %1138 = vmatprep.subr.mxu0 0.0
        %1139 = vmatpush1.xpose.msra.mxu0 0.0
        %1140 = vmatprep.subr.mxu0 0.0
        %1141 = vmatpush1.xpose.msra.mxu0 0.0
        %1142 = vmatprep.subr.mxu0 0.0
        %1143 = vmatpush1.xpose.msra.mxu0 0.0
        %1144 = vmatprep.subr.mxu0 0.0
        %1145 = vmatpush1.xpose.msra.mxu0 0.0
        %1146 = vmatprep.subr.mxu0 0.0
        %1147 = vmatpush1.xpose.msra.mxu0 %v879
        %1148 = vmatprep.subr.mxu0 0.0
        %1149 = vmatpush2.xpose.msra.mxu0 0.0
        %1150 = vmatprep.subr.mxu0 0.0
        %1151 = vmatpush2.xpose.msra.mxu0 0.0
        %1152 = vmatprep.subr.mxu0 0.0
        %1153 = vmatpush2.xpose.msra.mxu0 0.0
        %1154 = vmatprep.subr.mxu0 0.0
        %1155 = vmatpush2.xpose.msra.mxu0 0.0
        %1156 = vmatprep.subr.mxu0 0.0
        %1157 = vmatpush2.xpose.msra.mxu0 0.0
        %1158 = vmatprep.subr.mxu0 0.0
        %1159 = vmatpush2.xpose.msra.mxu0 0.0
        %1160 = vmatprep.subr.mxu0 0.0
        %1161 = vmatpush2.xpose.msra.mxu0 0.0
        %1162 = vmatprep.subr.mxu0 0.0
        %1163 = vmatpush2.xpose.msra.mxu0 0.0
        %1164 = vmatprep.subr.mxu0 0.0
        %1165 = vmatpush2.xpose.msra.mxu0 0.0
        %1166 = vmatprep.subr.mxu0 0.0
        %1167 = vmatpush2.xpose.msra.mxu0 0.0
        %1168 = vmatprep.subr.mxu0 0.0
        %1169 = vmatpush2.xpose.msra.mxu0 0.0
        %1170 = vmatprep.subr.mxu0 0.0
        %1171 = vmatpush2.xpose.msra.mxu0 0.0
        %1172 = vmatprep.subr.mxu0 0.0
        %1173 = vmatpush2.xpose.msra.mxu0 0.0
        %1174 = vmatprep.subr.mxu0 0.0
        %1175 = vmatpush2.xpose.msra.mxu0 0.0
        %1176 = vmatprep.subr.mxu0 0.0
        %1177 = vmatpush2.xpose.msra.mxu0 0.0
        %1178 = vmatprep.subr.mxu0 0.0
        %1179 = vmatpush2.xpose.msra.mxu0 0.0
        %1180 = vmatprep.mubr.f32.mxu0 0.0
        %1181 = vmatmul.mubr.f32.gmra.mxu0 %v1114
        %v1182 = vpop.f32.mrf.mxu0
        %v1183 = vadd.f32 %v1109, %v1182
        %v1184 = vpop.f32.mrf.mxu0
        %1185 = vdwg.mxu0
        %v1186 = vsel %vm474, %v1183, -inf
        %1187 = vmax.xlane.f32.xlu0 %v1186
        %v1188 = vpop.xlane.xlu0 %1187
        %v1189 = vsub.f32 %v1183, %v1188
        %v1190 = vmul.f32 %v1189, 1.442695
        %v1191 = vpow.pop %v1190
        %v1192 = vsel %vm474, %v1191, 0.0
        %1193 = vadd.xlane.f32.xlu0 %v1192
        %v1194 = vpop.xlane.xlu0 %1193
        %v1196 = vsel %vm474, %v1191, 0
        %1198 = vmatprep.subr.mxu0 0.0
        %1199 = vmatpush1.msra.mxu0 0.0
        %1200 = vmatprep.subr.mxu0 0.0
        %1201 = vmatpush1.msra.mxu0 0.0
        %1202 = vmatprep.subr.mxu0 0.0
        %1203 = vmatpush1.msra.mxu0 0.0
        %1204 = vmatprep.subr.mxu0 0.0
        %1205 = vmatpush1.msra.mxu0 0.0
        %1206 = vmatprep.subr.mxu0 0.0
        %1207 = vmatpush1.msra.mxu0 0.0
        %1208 = vmatprep.subr.mxu0 0.0
        %1209 = vmatpush1.msra.mxu0 0.0
        %1210 = vmatprep.subr.mxu0 0.0
        %1211 = vmatpush1.msra.mxu0 0.0
        %1212 = vmatprep.subr.mxu0 0.0
        %1213 = vmatpush1.msra.mxu0 0.0
        %1214 = vmatprep.subr.mxu0 0.0
        %1215 = vmatpush1.msra.mxu0 0.0
        %1216 = vmatprep.subr.mxu0 0.0
        %1217 = vmatpush1.msra.mxu0 0.0
        %1218 = vmatprep.subr.mxu0 0.0
        %1219 = vmatpush1.msra.mxu0 0.0
        %1220 = vmatprep.subr.mxu0 0.0
        %1221 = vmatpush1.msra.mxu0 0.0
        %1222 = vmatprep.subr.mxu0 0.0
        %1223 = vmatpush1.msra.mxu0 0.0
        %1224 = vmatprep.subr.mxu0 0.0
        %1225 = vmatpush1.msra.mxu0 0.0
        %1226 = vmatprep.subr.mxu0 0.0
        %1227 = vmatpush1.msra.mxu0 0.0
        %1228 = vmatprep.subr.mxu0 0.0
        %1229 = vmatpush1.msra.mxu0 %v961
        %1230 = vmatprep.subr.mxu0 0.0
        %1231 = vmatpush2.msra.mxu0 0.0
        %1232 = vmatprep.subr.mxu0 0.0
        %1233 = vmatpush2.msra.mxu0 0.0
        %1234 = vmatprep.subr.mxu0 0.0
        %1235 = vmatpush2.msra.mxu0 0.0
        %1236 = vmatprep.subr.mxu0 0.0
        %1237 = vmatpush2.msra.mxu0 0.0
        %1238 = vmatprep.subr.mxu0 0.0
        %1239 = vmatpush2.msra.mxu0 0.0
        %1240 = vmatprep.subr.mxu0 0.0
        %1241 = vmatpush2.msra.mxu0 0.0
        %1242 = vmatprep.subr.mxu0 0.0
        %1243 = vmatpush2.msra.mxu0 0.0
        %1244 = vmatprep.subr.mxu0 0.0
        %1245 = vmatpush2.msra.mxu0 0.0
        %1246 = vmatprep.subr.mxu0 0.0
        %1247 = vmatpush2.msra.mxu0 0.0
        %1248 = vmatprep.subr.mxu0 0.0
        %1249 = vmatpush2.msra.mxu0 0.0
        %1250 = vmatprep.subr.mxu0 0.0
        %1251 = vmatpush2.msra.mxu0 0.0
        %1252 = vmatprep.subr.mxu0 0.0
        %1253 = vmatpush2.msra.mxu0 0.0
        %1254 = vmatprep.subr.mxu0 0.0
        %1255 = vmatpush2.msra.mxu0 0.0
        %1256 = vmatprep.subr.mxu0 0.0
        %1257 = vmatpush2.msra.mxu0 0.0
        %1258 = vmatprep.subr.mxu0 0.0
        %1259 = vmatpush2.msra.mxu0 0.0
        %1260 = vmatprep.subr.mxu0 0.0
        %1261 = vmatpush2.msra.mxu0 0.0
        %1262 = vmatprep.mubr.f32.mxu0 0.0
        %1263 = vmatmul.mubr.f32.gmra.mxu0 %v1196
        %v1264 = vpop.f32.mrf.mxu0
        %v1265 = vadd.f32 0.0, %v1264
        %v1266 = vpop.f32.mrf.mxu0
        %1267 = vdwg.mxu0
        %v1268 = vrcp.pop %v1194
        %v1269 = vmul.f32 %v1265, %v1268
        %1271 = vrot.lane.b32.xlu0 %v794, 8
        %v1272 = vpop.permute.xlu0 %1271
        %1275 = vrot.lane.b32.xlu0 %v1037, 16
        %v1276 = vpop.permute.xlu0 %1275
        %1279 = vrot.lane.b32.xlu0 %v1269, 24
        %v1280 = vpop.permute.xlu0 %1279
        %v1282 = vsel %vm474, %v562, %v1272
        %vm1283 = vcmask 130048
        %v1284 = vsel %vm1283, %v1282, %v1276
        %vm1285 = vcmask 195584
        %v1286 = vsel %vm1285, %v1284, %v1280
        %v1287 = vld [vmem:[%s2] sm:$0xff]
        %v1288 = vld [vmem:[%s2 + $0x8] sm:$0xff]
        %v1289 = vld [vmem:[%s2 + $0x10] sm:$0xff]
        %v1290 = vld [vmem:[%s2 + $0x18] sm:$0xff]
        %v1292 = vsel %vm198, %v1286, 0
        %1294 = vmatprep.subr.mxu0 0.0
        %1295 = vmatpush1.msra.mxu0 0.0
        %1296 = vmatprep.subr.mxu0 0.0
        %1297 = vmatpush1.msra.mxu0 0.0
        %1298 = vmatprep.subr.mxu0 0.0
        %1299 = vmatpush1.msra.mxu0 0.0
        %1300 = vmatprep.subr.mxu0 0.0
        %1301 = vmatpush1.msra.mxu0 0.0
        %1302 = vmatprep.subr.mxu0 0.0
        %1303 = vmatpush1.msra.mxu0 0.0
        %1304 = vmatprep.subr.mxu0 0.0
        %1305 = vmatpush1.msra.mxu0 0.0
        %1306 = vmatprep.subr.mxu0 0.0
        %1307 = vmatpush1.msra.mxu0 0.0
        %1308 = vmatprep.subr.mxu0 0.0
        %1309 = vmatpush1.msra.mxu0 0.0
        %1310 = vmatprep.subr.mxu0 0.0
        %1311 = vmatpush1.msra.mxu0 0.0
        %1312 = vmatprep.subr.mxu0 0.0
        %1313 = vmatpush1.msra.mxu0 0.0
        %1314 = vmatprep.subr.mxu0 0.0
        %1315 = vmatpush1.msra.mxu0 0.0
        %1316 = vmatprep.subr.mxu0 0.0
        %1317 = vmatpush1.msra.mxu0 0.0
        %1318 = vmatprep.subr.mxu0 0.0
        %1319 = vmatpush1.msra.mxu0 %v1290
        %1320 = vmatprep.subr.mxu0 0.0
        %1321 = vmatpush1.msra.mxu0 %v1289
        %1322 = vmatprep.subr.mxu0 0.0
        %1323 = vmatpush1.msra.mxu0 %v1288
        %1324 = vmatprep.subr.mxu0 0.0
        %1325 = vmatpush1.msra.mxu0 %v1287
        %1326 = vmatprep.subr.mxu0 0.0
        %1327 = vmatpush2.msra.mxu0 0.0
        %1328 = vmatprep.subr.mxu0 0.0
        %1329 = vmatpush2.msra.mxu0 0.0
        %1330 = vmatprep.subr.mxu0 0.0
        %1331 = vmatpush2.msra.mxu0 0.0
        %1332 = vmatprep.subr.mxu0 0.0
        %1333 = vmatpush2.msra.mxu0 0.0
        %1334 = vmatprep.subr.mxu0 0.0
        %1335 = vmatpush2.msra.mxu0 0.0
        %1336 = vmatprep.subr.mxu0 0.0
        %1337 = vmatpush2.msra.mxu0 0.0
        %1338 = vmatprep.subr.mxu0 0.0
        %1339 = vmatpush2.msra.mxu0 0.0
        %1340 = vmatprep.subr.mxu0 0.0
        %1341 = vmatpush2.msra.mxu0 0.0
        %1342 = vmatprep.subr.mxu0 0.0
        %1343 = vmatpush2.msra.mxu0 0.0
        %1344 = vmatprep.subr.mxu0 0.0
        %1345 = vmatpush2.msra.mxu0 0.0
        %1346 = vmatprep.subr.mxu0 0.0
        %1347 = vmatpush2.msra.mxu0 0.0
        %1348 = vmatprep.subr.mxu0 0.0
        %1349 = vmatpush2.msra.mxu0 0.0
        %1350 = vmatprep.subr.mxu0 0.0
        %1351 = vmatpush2.msra.mxu0 0.0
        %1352 = vmatprep.subr.mxu0 0.0
        %1353 = vmatpush2.msra.mxu0 0.0
        %1354 = vmatprep.subr.mxu0 0.0
        %1355 = vmatpush2.msra.mxu0 0.0
        %1356 = vmatprep.subr.mxu0 0.0
        %1357 = vmatpush2.msra.mxu0 0.0
        %1358 = vmatprep.mubr.f32.mxu0 0.0
        %1359 = vmatmul.mubr.f32.gmra.mxu0 %v1292
        %v1360 = vpop.f32.mrf.mxu0
        %v1361 = vadd.f32 0.0, %v1360
        %v1362 = vpop.f32.mrf.mxu0
        %1363 = vdwg.mxu0
        %1364 = vst.msk [vmem:[%s188] sm:$0xff] %vm198, %v1361
        %s1365 = sand.u32 %s115, 1
        %s1366 = scalar_lea.sflag [#allocation3], %s1365
        %s1367 = sand.u32 %s115, 1
        %s1368 = smul.addr %s1367, 8
        %s1369 = scalar_lea.vmem [#allocation2], %s1368
        // Predicated region
        $region37: #{fused_attention.1} parent=35 // pred_check
          %p1370 = pneg %p125
        $region38: #{fused_attention.1} parent=35 // pred_check_branch
          %1372 = sbr.rel (%p1370) target = $region40
        $region39: #{fused_attention.1} parent=35 // pred_region
          %s1374 = ssub.s32 128, 128
          %1375 = vsyncadd %s1366, %s1374
          %s1376 = smul.addr %s18, 128
          %s1377 = scalar_lea.hbm %s4, %s1376
          %s1379 = sshll.u32 %s1369, 4
          %s1380 = int_to_ptr.vmem [resolvable:$true] %s1379
          %1382 = dma.vmem_to_hbm [thread:$0]  %s1380, 128, %s1377, %s1366
        $region40: #{fused_attention.1} parent=35 // pred_fallthru
          _
      $region36: #{fused_attention.1} parent=5 // pred_fallthru
        _
      %p1383 = scmp.le.s32.totalorder 2, %s13
      // Predicated region
      $region41: #{fused_attention.1} parent=5 // pred_check
        %p1384 = pneg %p1383
      $region42: #{fused_attention.1} parent=5 // pred_check_branch
        %1386 = sbr.rel (%p1384) target = $region44
      $region43: #{fused_attention.1} parent=5 // pred_region
        %s1387 = ssub.s32 %s13, 2
        // Predicated region
        $region45: #{fused_attention.1} parent=43 // pred_check
          %p1388 = pneg %p131
        $region46: #{fused_attention.1} parent=43 // pred_check_branch
          %1390 = sbr.rel (%p1388) target = $region48
        $region47: #{fused_attention.1} parent=43 // pred_region
          %s1391 = sand.u32 %s116, 1
          %s1392 = scalar_lea.sflag [#allocation3], %s1391
          %s1393 = sand.u32 %s116, 1
          %s1394 = smul.addr %s1393, 8
          %s1395 = scalar_lea.vmem [#allocation2], %s1394
          %1396 = dma.done %s1392, 128
        $region48: #{fused_attention.1} parent=43 // pred_fallthru
          _
      $region44: #{fused_attention.1} parent=5 // pred_fallthru
        _
    $region6: #{fused_attention.1} parent=1 // loop_footer
      %s17 = sadd.s32 1, %s13
    $region7: #{fused_attention.1} parent=1 // loop_footer_branch
      %12 = sbr.rel target = $region3
    $region8: #{fused_attention.1} parent=1 // loop_exit
      _
    %1397 = vsyncpa [#allocation3], 1
    %s1398 = scalar_lea.sflag [#allocation3], 1
    %1399 = vsyncpa %s1398, 1

</llo_original>
